<compile_context>
chip_gen: v5e
topology: v5e:2x2
jax: 0.10.0
libtpu: 0.0.40
codegen_flags: <defaults>
</compile_context>

<pallas_src>
import jax
import jax.numpy as jnp
from jax.experimental import pallas as pl
from jax.experimental.pallas import tpu as pltpu


# ----------------------------------------------------------------------------
# Fused Pallas kernel
# ----------------------------------------------------------------------------
def _make_basic_block_kernel(H, W, Cin, C):
    """Build the fused BasicBlock kernel for static shapes."""
    Hp, Wp = H + 2, W + 2      # padded spatial dims
    P = Hp * Wp                # flattened padded spatial size
    Pg = P + 2                 # + one guard element at each end
    M = H * Wp                 # positions computed per stage (padded rows 1..H)
    Mw = M + 2                 # widened partial width (covers col shifts -1/0/+1)
    K0 = 1 + Wp                # guarded-flat index of output position m = 0

    def conv_stage(src, w_ref, bias):
        # src: (cin, Pg) activation in guarded flattened-padded layout.
        # One matmul per stage; 3 row-tap slices instead of 9 im2col taps, the
        # +-1 column shifts come from slicing the widened (Mw) partials and
        # are exact because the guard cells bound every slice.
        a = src.astype(jnp.bfloat16)
        rows = [a[:, K0 + di * Wp - 1: K0 + di * Wp - 1 + Mw]
                for di in (-1, 0, 1)]
        cols = jnp.concatenate(rows, axis=0)                     # (3*cin, Mw)
        part = jnp.dot(w_ref[...], cols,
                       preferred_element_type=jnp.float32)       # (3*C, Mw) f32
        y = (part[0 * C:1 * C, 0:M]            # kw = 0 (dj = -1)
             + part[1 * C:2 * C, 1:M + 1]      # kw = 1 (dj =  0)
             + part[2 * C:3 * C, 2:M + 2])     # kw = 2 (dj = +1)
        # BN scale already folded into w_ref; bias-add + ReLU only (f32 VPU).
        return jnp.maximum(y + bias, 0.0)

    def kernel(x_ref, w1a_ref, w1b_ref, w2a_ref, w2b_ref, b_ref, out_ref, buf):
        # Mask zeroing outputs computed at the left/right padding columns
        # (those positions become the next stage's zero halo).
        col = jax.lax.broadcasted_iota(jnp.int32, (1, M), 1) % Wp
        mask = jnp.where((col == 0) | (col == Wp - 1), 0.0, 1.0)

        # Zero only the strips the per-stage stores never touch (front guard +
        # top halo row, bottom halo row + back guard).  Kept UNCONDITIONAL:
        # with "parallel" grid semantics each TensorCore has its own scratch
        # and may never execute program_id 0, so a zero-once guard is unsafe.
        zstrip = jnp.zeros((C, K0), buf.dtype)
        buf[:, pl.ds(0, K0)] = zstrip
        buf[:, pl.ds(K0 + M, K0)] = zstrip

        def store(y):                      # stage output -> VMEM-resident buffer
            buf[:, pl.ds(K0, M)] = y.astype(buf.dtype)

        # --- double_conv 1 ---
        y = conv_stage(x_ref[0], w1a_ref, b_ref[0])
        store(y * mask)
        y = conv_stage(buf[...], w1b_ref, b_ref[1])
        res = y * mask                     # residual stays on-chip, f32
        store(res)
        # --- double_conv 2 ---
        y = conv_stage(buf[...], w2a_ref, b_ref[2])
        store(y * mask)
        y = conv_stage(buf[...], w2b_ref, b_ref[3])

        # Residual add + final BasicBlock ReLU, then compact the H*(W+2)-wide
        # stage layout into the dense H*W (= 2x128 lane) output block so the
        # HBM writeback is lane-dense and no wrapper slice pass is needed.
        final = jnp.maximum(y + res, 0.0)                        # (C, M) f32
        for r in range(H):
            out_ref[0, :, pl.ds(r * W, W)] = (
                final[:, r * Wp + 1: r * Wp + 1 + W].astype(out_ref.dtype))

    return kernel, Pg


# ----------------------------------------------------------------------------
# Wrapper
# ----------------------------------------------------------------------------
def basic_block_forward(x_nchw, p):
    """BasicBlock.forward (no SE, no downsample, stride=1, dilation=1)."""
    N, Cin, H, W = x_nchw.shape
    C = p["w1b"].shape[-1]                      # planes
    Hp, Wp = H + 2, W + 2
    HW = H * W
    kernel, Pg = _make_basic_block_kernel(H, W, Cin, C)

    # Pad the block input ONCE, flatten spatial, add 1-element guards; bf16
    # halves the input DMA bytes (matmul accumulates in f32).
    xg = jnp.pad(x_nchw.astype(jnp.bfloat16), ((0, 0), (0, 0), (1, 1), (1, 1)))
    xg = jnp.pad(xg.reshape(N, Cin, Hp * Wp), ((0, 0), (0, 0), (1, 1)))

    def w_mat(w_hwio, scale):
        # (3,3,cin,C) HWIO -> (3C, 3cin) with rows grouped by kw and cols by
        # (kh, cin); BN scale folded in f32 BEFORE the bf16 cast.
        cin, cout = w_hwio.shape[2], w_hwio.shape[3]
        w = w_hwio.astype(jnp.float32) * scale.reshape(1, 1, 1, cout)
        w = jnp.transpose(w, (1, 3, 0, 2))              # (kw, cout, kh, cin)
        return w.reshape(3 * cout, 3 * cin).astype(jnp.bfloat16)

    w1a = w_mat(p["w1a"], p["s1a"])
    w1b = w_mat(p["w1b"], p["s1b"])
    w2a = w_mat(p["w2a"], p["s2a"])
    w2b = w_mat(p["w2b"], p["s2b"])
    biases = jnp.stack([p["b1a"], p["b1b"], p["b2a"], p["b2b"]]
                       ).reshape(4, C, 1).astype(jnp.float32)

    def full(shape):
        return pl.BlockSpec(shape, lambda n: (0,) * len(shape))

    out = pl.pallas_call(
        kernel,
        out_shape=jax.ShapeDtypeStruct((N, C, HW), jnp.float32),
        grid=(N,),
        in_specs=[
            pl.BlockSpec((1, Cin, Pg), lambda n: (n, 0, 0)),
            full((3 * C, 3 * Cin)),
            full((3 * C, 3 * C)),
            full((3 * C, 3 * C)),
            full((3 * C, 3 * C)),
            full((4, C, 1)),
        ],
        out_specs=pl.BlockSpec((1, C, HW), lambda n: (n, 0, 0)),
        scratch_shapes=[pltpu.VMEM((C, Pg), jnp.bfloat16)],
        compiler_params=pltpu.CompilerParams(
            dimension_semantics=("parallel",)),
    )(xg, w1a, w1b, w2a, w2b, biases)

    # (N, C, H*W) -> NCHW; pure metadata reshape (no slicing / data movement).
    return out.reshape(N, C, H, W)


# ----------------------------------------------------------------------------
# Parameter construction (conv bias + eval-mode BN folded into scale/bias)
# ----------------------------------------------------------------------------
def fuse_bn(conv_bias, gamma, beta, running_mean, running_var, eps=1e-5):
    inv_std = 1.0 / jnp.sqrt(running_var + eps)
    scale = gamma * inv_std
    bias = beta + (conv_bias - running_mean) * scale
    return scale, bias


def make_params(key, inplanes, planes):
    """Deterministic parameter init matching BasicBlock(inplanes, planes)."""
    def conv_init(k, cin, cout):
        kw, kb = jax.random.split(k)
        w = jax.random.normal(kw, (3, 3, cin, cout), jnp.float32) * 0.1  # HWIO
        b = jax.random.normal(kb, (cout,), jnp.float32) * 0.1
        return w, b

    def bn_init(k, c):
        k1, k2, k3 = jax.random.split(k, 3)
        gamma = 1.0 + 0.1 * jax.random.normal(k1, (c,), jnp.float32)
        beta = 0.1 * jax.random.normal(k2, (c,), jnp.float32)
        rmean = 0.1 * jax.random.normal(k3, (c,), jnp.float32)
        rvar = jnp.ones((c,), jnp.float32)
        return gamma, beta, rmean, rvar

    keys = jax.random.split(key, 8)
    p = {}
    p["w1a"], b1a = conv_init(keys[0], inplanes, planes)
    p["s1a"], p["b1a"] = fuse_bn(b1a, *bn_init(keys[1], planes))
    p["w1b"], b1b = conv_init(keys[2], planes, planes)
    p["s1b"], p["b1b"] = fuse_bn(b1b, *bn_init(keys[3], planes))
    p["w2a"], b2a = conv_init(keys[4], planes, planes)
    p["s2a"], p["b2a"] = fuse_bn(b2a, *bn_init(keys[5], planes))
    p["w2b"], b2b = conv_init(keys[6], planes, planes)
    p["s2b"], p["b2b"] = fuse_bn(b2b, *bn_init(keys[7], planes))
    return p


# ----------------------------------------------------------------------------
# Pure-JAX reference (same precision policy as the kernel: BN scale folded
# into the weights in f32, bf16 operands, f32 accumulation)
# ----------------------------------------------------------------------------
def _ref_conv_bn_relu(x_nchw, w_hwio, scale, bias):
    w_eff = (w_hwio.astype(jnp.float32)
             * scale.reshape(1, 1, 1, -1)).astype(jnp.bfloat16)
    y = jax.lax.conv_general_dilated(
        x_nchw.astype(jnp.bfloat16), w_eff,
        window_strides=(1, 1), padding=((1, 1), (1, 1)),
        dimension_numbers=("NCHW", "HWIO", "NCHW"),
        preferred_element_type=jnp.float32)
    return jax.nn.relu(y + bias.reshape(1, -1, 1, 1))


def basic_block_reference(x_nchw, p):
    x = x_nchw.astype(jnp.float32)
    h = _ref_conv_bn_relu(x, p["w1a"], p["s1a"], p["b1a"])
    h = _ref_conv_bn_relu(h, p["w1b"], p["s1b"], p["b1b"])
    residual = h
    h = _ref_conv_bn_relu(h, p["w2a"], p["s2a"], p["b2a"])
    h = _ref_conv_bn_relu(h, p["w2b"], p["s2b"], p["b2b"])
    return jax.nn.relu(h + residual)


if __name__ == "__main__":
    key = jax.random.PRNGKey(0)
    k_x, k_p = jax.random.split(key)

    N, inplanes, planes, HW = 2, 4, 8, 16
    x = jax.random.normal(k_x, (N, inplanes, HW, HW), jnp.float32)   # NCHW
    params = make_params(k_p, inplanes, planes)

    fwd = jax.jit(basic_block_forward)
    out = jax.block_until_ready(fwd(x, params))
    ref = jax.block_until_ready(basic_block_reference(x, params))

    assert out.shape == (N, planes, HW, HW), out.shape
    max_err = float(jnp.max(jnp.abs(out - ref)))
    assert jnp.allclose(out, ref, atol=1e-2, rtol=1e-2), max_err
    print("KERNEL_OK")
</pallas_src>

<mosaic_0001>
module attributes {stable_mosaic.version = 11 : i64} {
  func.func @kernel(%arg0: i32, %arg1: memref<1x4x326xbf16, #tpu.memory_space<vmem>>, %arg2: memref<24x12xbf16, #tpu.memory_space<vmem>>, %arg3: memref<24x24xbf16, #tpu.memory_space<vmem>>, %arg4: memref<24x24xbf16, #tpu.memory_space<vmem>>, %arg5: memref<24x24xbf16, #tpu.memory_space<vmem>>, %arg6: memref<4x8x1xf32, #tpu.memory_space<vmem>>, %arg7: memref<1x8x256xf32, #tpu.memory_space<vmem>>, %arg8: memref<8x326xbf16, #tpu.memory_space<vmem>>) attributes {dimension_semantics = [#tpu.dimension_semantics<parallel>], iteration_bounds = array<i64: 2>, scalar_prefetch = 0 : i64, scratch_operands = 1 : i64, tpu.core_type = #tpu.core_type<tc>, window_params = [{transform_indices = @transform_0, window_bounds = array<i64: 1, 4, 326>}, {pipeline_mode = #tpu.pipeline_mode<synchronous>, transform_indices = @transform_1, window_bounds = array<i64: 24, 12>}, {pipeline_mode = #tpu.pipeline_mode<synchronous>, transform_indices = @transform_2, window_bounds = array<i64: 24, 24>}, {pipeline_mode = #tpu.pipeline_mode<synchronous>, transform_indices = @transform_3, window_bounds = array<i64: 24, 24>}, {pipeline_mode = #tpu.pipeline_mode<synchronous>, transform_indices = @transform_4, window_bounds = array<i64: 24, 24>}, {pipeline_mode = #tpu.pipeline_mode<synchronous>, transform_indices = @transform_5, window_bounds = array<i64: 4, 8, 1>}, {transform_indices = @transform_6, window_bounds = array<i64: 1, 8, 256>}]} {
    %0 = tpu.iota {dimensions = array<i32: 1>} : vector<1x288xi32>
    %c18_i32 = arith.constant 18 : i32
    %c0_i32 = arith.constant 0 : i32
    %1 = arith.cmpi eq, %c18_i32, %c0_i32 : i32
    %c1_i32 = arith.constant 1 : i32
    %2 = arith.select %1, %c1_i32, %c18_i32 : i32
    %3 = vector.broadcast %2 : i32 to vector<1x288xi32>
    %4 = arith.remsi %0, %3 : vector<1x288xi32>
    %c0_i32_0 = arith.constant 0 : i32
    %5 = vector.broadcast %c0_i32_0 : i32 to vector<1x288xi32>
    %6 = arith.cmpi ne, %4, %5 : vector<1x288xi32>
    %c0_i32_1 = arith.constant 0 : i32
    %7 = vector.broadcast %c0_i32_1 : i32 to vector<1x288xi32>
    %8 = arith.cmpi slt, %4, %7 : vector<1x288xi32>
    %c0_i32_2 = arith.constant 0 : i32
    %9 = arith.cmpi slt, %2, %c0_i32_2 : i32
    %10 = vector.broadcast %9 : i1 to vector<1x288xi1>
    %11 = vector.broadcast %10 : vector<1x288xi1> to vector<1x288xi1>
    %12 = arith.xori %8, %11 : vector<1x288xi1>
    %13 = arith.andi %12, %6 : vector<1x288xi1>
    %14 = vector.broadcast %2 : i32 to vector<1x288xi32>
    %15 = arith.addi %4, %14 : vector<1x288xi32>
    %16 = arith.select %13, %15, %4 : vector<1x288xi1>, vector<1x288xi32>
    %c0_i32_3 = arith.constant 0 : i32
    %17 = vector.broadcast %c0_i32_3 : i32 to vector<1x288xi32>
    %18 = arith.cmpi eq, %16, %17 : vector<1x288xi32>
    %c17_i32 = arith.constant 17 : i32
    %19 = vector.broadcast %c17_i32 : i32 to vector<1x288xi32>
    %20 = arith.cmpi eq, %16, %19 : vector<1x288xi32>
    %21 = arith.ori %18, %20 : vector<1x288xi1>
    %cst = arith.constant 0.000000e+00 : f32
    %cst_4 = arith.constant 1.000000e+00 : f32
    %22 = vector.broadcast %cst : f32 to vector<1x288xf32>
    %23 = vector.broadcast %cst_4 : f32 to vector<1x288xf32>
    %24 = arith.select %21, %22, %23 : vector<1x288xi1>, vector<1x288xf32>
    %cst_5 = arith.constant 0.000000e+00 : bf16
    %25 = vector.broadcast %cst_5 : bf16 to vector<8x19xbf16>
    %c0 = arith.constant 0 : index
    %c0_6 = arith.constant 0 : index
    %26 = vector.load %arg8[%c0, %c0_6] : memref<8x326xbf16, #tpu.memory_space<vmem>>, vector<8x19xbf16>
    tpu.vector_store %arg8[%c0, %c0_6], %25 {strides = array<i32>} : memref<8x326xbf16, #tpu.memory_space<vmem>>, vector<8x19xbf16>,
    %c0_7 = arith.constant 0 : index
    %c307 = arith.constant 307 : index
    %27 = vector.load %arg8[%c0_7, %c307] : memref<8x326xbf16, #tpu.memory_space<vmem>>, vector<8x19xbf16>
    tpu.vector_store %arg8[%c0_7, %c307], %25 {strides = array<i32>} : memref<8x326xbf16, #tpu.memory_space<vmem>>, vector<8x19xbf16>,
    %c0_8 = arith.constant 0 : index
    %c0_9 = arith.constant 0 : index
    %c0_10 = arith.constant 0 : index
    %28 = vector.load %arg1[%c0_8, %c0_9, %c0_10] : memref<1x4x326xbf16, #tpu.memory_space<vmem>>, vector<1x4x326xbf16>
    %29 = vector.shape_cast %28 : vector<1x4x326xbf16> to vector<4x326xbf16>
    %c0_11 = arith.constant 0 : index
    %c0_12 = arith.constant 0 : index
    %c0_13 = arith.constant 0 : index
    %30 = vector.load %arg6[%c0_11, %c0_12, %c0_13] : memref<4x8x1xf32, #tpu.memory_space<vmem>>, vector<1x8x1xf32>
    %31 = vector.shape_cast %30 : vector<1x8x1xf32> to vector<8x1xf32>
    %32 = vector.extract_strided_slice %29 {offsets = [0, 0], sizes = [4, 290], strides = [1, 1]} : vector<4x326xbf16> to vector<4x290xbf16>
    %33 = vector.extract_strided_slice %29 {offsets = [0, 18], sizes = [4, 290], strides = [1, 1]} : vector<4x326xbf16> to vector<4x290xbf16>
    %34 = vector.extract_strided_slice %29 {offsets = [0, 36], sizes = [4, 290], strides = [1, 1]} : vector<4x326xbf16> to vector<4x290xbf16>
    %35 = tpu.concatenate %32, %33, %34 in 0 : vector<4x290xbf16>, vector<4x290xbf16>, vector<4x290xbf16> -> vector<12x290xbf16>
    %c0_14 = arith.constant 0 : index
    %c0_15 = arith.constant 0 : index
    %36 = vector.load %arg2[%c0_14, %c0_15] : memref<24x12xbf16, #tpu.memory_space<vmem>>, vector<24x12xbf16>
    %cst_16 = arith.constant dense<0.000000e+00> : vector<24x290xf32>
    %37 = tpu.matmul %36, %35, %cst_16 {dimension_numbers = #tpu.dot_dimension_numbers<[1], [0], [0], [1], [0, 0, 1, 1], [], []>} : vector<24x12xbf16>, vector<12x290xbf16>, vector<24x290xf32> -> vector<24x290xf32>
    %38 = vector.extract_strided_slice %37 {offsets = [0, 0], sizes = [8, 288], strides = [1, 1]} : vector<24x290xf32> to vector<8x288xf32>
    %39 = vector.extract_strided_slice %37 {offsets = [8, 1], sizes = [8, 288], strides = [1, 1]} : vector<24x290xf32> to vector<8x288xf32>
    %40 = arith.addf %38, %39 : vector<8x288xf32>
    %41 = vector.extract_strided_slice %37 {offsets = [16, 2], sizes = [8, 288], strides = [1, 1]} : vector<24x290xf32> to vector<8x288xf32>
    %42 = arith.addf %40, %41 : vector<8x288xf32>
    %43 = vector.broadcast %31 : vector<8x1xf32> to vector<8x288xf32>
    %44 = arith.addf %42, %43 : vector<8x288xf32>
    %cst_17 = arith.constant 0.000000e+00 : f32
    %45 = vector.broadcast %cst_17 : f32 to vector<8x288xf32>
    %46 = arith.maximumf %44, %45 : vector<8x288xf32>
    %47 = vector.broadcast %24 : vector<1x288xf32> to vector<8x288xf32>
    %48 = arith.mulf %46, %47 : vector<8x288xf32>
    %49 = arith.truncf %48 : vector<8x288xf32> to vector<8x288xbf16>
    %c0_18 = arith.constant 0 : index
    %c19 = arith.constant 19 : index
    %50 = vector.load %arg8[%c0_18, %c19] : memref<8x326xbf16, #tpu.memory_space<vmem>>, vector<8x288xbf16>
    tpu.vector_store %arg8[%c0_18, %c19], %49 {strides = array<i32>} : memref<8x326xbf16, #tpu.memory_space<vmem>>, vector<8x288xbf16>,
    %c0_19 = arith.constant 0 : index
    %c0_20 = arith.constant 0 : index
    %51 = vector.load %arg8[%c0_19, %c0_20] : memref<8x326xbf16, #tpu.memory_space<vmem>>, vector<8x326xbf16>
    %c1 = arith.constant 1 : index
    %c0_21 = arith.constant 0 : index
    %c0_22 = arith.constant 0 : index
    %52 = vector.load %arg6[%c1, %c0_21, %c0_22] : memref<4x8x1xf32, #tpu.memory_space<vmem>>, vector<1x8x1xf32>
    %53 = vector.shape_cast %52 : vector<1x8x1xf32> to vector<8x1xf32>
    %54 = vector.extract_strided_slice %51 {offsets = [0, 0], sizes = [8, 290], strides = [1, 1]} : vector<8x326xbf16> to vector<8x290xbf16>
    %55 = vector.extract_strided_slice %51 {offsets = [0, 18], sizes = [8, 290], strides = [1, 1]} : vector<8x326xbf16> to vector<8x290xbf16>
    %56 = vector.extract_strided_slice %51 {offsets = [0, 36], sizes = [8, 290], strides = [1, 1]} : vector<8x326xbf16> to vector<8x290xbf16>
    %57 = tpu.concatenate %54, %55, %56 in 0 : vector<8x290xbf16>, vector<8x290xbf16>, vector<8x290xbf16> -> vector<24x290xbf16>
    %c0_23 = arith.constant 0 : index
    %c0_24 = arith.constant 0 : index
    %58 = vector.load %arg3[%c0_23, %c0_24] : memref<24x24xbf16, #tpu.memory_space<vmem>>, vector<24x24xbf16>
    %cst_25 = arith.constant dense<0.000000e+00> : vector<24x290xf32>
    %59 = tpu.matmul %58, %57, %cst_25 {dimension_numbers = #tpu.dot_dimension_numbers<[1], [0], [0], [1], [0, 0, 1, 1], [], []>} : vector<24x24xbf16>, vector<24x290xbf16>, vector<24x290xf32> -> vector<24x290xf32>
    %60 = vector.extract_strided_slice %59 {offsets = [0, 0], sizes = [8, 288], strides = [1, 1]} : vector<24x290xf32> to vector<8x288xf32>
    %61 = vector.extract_strided_slice %59 {offsets = [8, 1], sizes = [8, 288], strides = [1, 1]} : vector<24x290xf32> to vector<8x288xf32>
    %62 = arith.addf %60, %61 : vector<8x288xf32>
    %63 = vector.extract_strided_slice %59 {offsets = [16, 2], sizes = [8, 288], strides = [1, 1]} : vector<24x290xf32> to vector<8x288xf32>
    %64 = arith.addf %62, %63 : vector<8x288xf32>
    %65 = vector.broadcast %53 : vector<8x1xf32> to vector<8x288xf32>
    %66 = arith.addf %64, %65 : vector<8x288xf32>
    %cst_26 = arith.constant 0.000000e+00 : f32
    %67 = vector.broadcast %cst_26 : f32 to vector<8x288xf32>
    %68 = arith.maximumf %66, %67 : vector<8x288xf32>
    %69 = vector.broadcast %24 : vector<1x288xf32> to vector<8x288xf32>
    %70 = arith.mulf %68, %69 : vector<8x288xf32>
    %71 = arith.truncf %70 : vector<8x288xf32> to vector<8x288xbf16>
    %c0_27 = arith.constant 0 : index
    %c19_28 = arith.constant 19 : index
    %72 = vector.load %arg8[%c0_27, %c19_28] : memref<8x326xbf16, #tpu.memory_space<vmem>>, vector<8x288xbf16>
    tpu.vector_store %arg8[%c0_27, %c19_28], %71 {strides = array<i32>} : memref<8x326xbf16, #tpu.memory_space<vmem>>, vector<8x288xbf16>,
    %c0_29 = arith.constant 0 : index
    %c0_30 = arith.constant 0 : index
    %73 = vector.load %arg8[%c0_29, %c0_30] : memref<8x326xbf16, #tpu.memory_space<vmem>>, vector<8x326xbf16>
    %c2 = arith.constant 2 : index
    %c0_31 = arith.constant 0 : index
    %c0_32 = arith.constant 0 : index
    %74 = vector.load %arg6[%c2, %c0_31, %c0_32] : memref<4x8x1xf32, #tpu.memory_space<vmem>>, vector<1x8x1xf32>
    %75 = vector.shape_cast %74 : vector<1x8x1xf32> to vector<8x1xf32>
    %76 = vector.extract_strided_slice %73 {offsets = [0, 0], sizes = [8, 290], strides = [1, 1]} : vector<8x326xbf16> to vector<8x290xbf16>
    %77 = vector.extract_strided_slice %73 {offsets = [0, 18], sizes = [8, 290], strides = [1, 1]} : vector<8x326xbf16> to vector<8x290xbf16>
    %78 = vector.extract_strided_slice %73 {offsets = [0, 36], sizes = [8, 290], strides = [1, 1]} : vector<8x326xbf16> to vector<8x290xbf16>
    %79 = tpu.concatenate %76, %77, %78 in 0 : vector<8x290xbf16>, vector<8x290xbf16>, vector<8x290xbf16> -> vector<24x290xbf16>
    %c0_33 = arith.constant 0 : index
    %c0_34 = arith.constant 0 : index
    %80 = vector.load %arg4[%c0_33, %c0_34] : memref<24x24xbf16, #tpu.memory_space<vmem>>, vector<24x24xbf16>
    %cst_35 = arith.constant dense<0.000000e+00> : vector<24x290xf32>
    %81 = tpu.matmul %80, %79, %cst_35 {dimension_numbers = #tpu.dot_dimension_numbers<[1], [0], [0], [1], [0, 0, 1, 1], [], []>} : vector<24x24xbf16>, vector<24x290xbf16>, vector<24x290xf32> -> vector<24x290xf32>
    %82 = vector.extract_strided_slice %81 {offsets = [0, 0], sizes = [8, 288], strides = [1, 1]} : vector<24x290xf32> to vector<8x288xf32>
    %83 = vector.extract_strided_slice %81 {offsets = [8, 1], sizes = [8, 288], strides = [1, 1]} : vector<24x290xf32> to vector<8x288xf32>
    %84 = arith.addf %82, %83 : vector<8x288xf32>
    %85 = vector.extract_strided_slice %81 {offsets = [16, 2], sizes = [8, 288], strides = [1, 1]} : vector<24x290xf32> to vector<8x288xf32>
    %86 = arith.addf %84, %85 : vector<8x288xf32>
    %87 = vector.broadcast %75 : vector<8x1xf32> to vector<8x288xf32>
    %88 = arith.addf %86, %87 : vector<8x288xf32>
    %cst_36 = arith.constant 0.000000e+00 : f32
    %89 = vector.broadcast %cst_36 : f32 to vector<8x288xf32>
    %90 = arith.maximumf %88, %89 : vector<8x288xf32>
    %91 = vector.broadcast %24 : vector<1x288xf32> to vector<8x288xf32>
    %92 = arith.mulf %90, %91 : vector<8x288xf32>
    %93 = arith.truncf %92 : vector<8x288xf32> to vector<8x288xbf16>
    %c0_37 = arith.constant 0 : index
    %c19_38 = arith.constant 19 : index
    %94 = vector.load %arg8[%c0_37, %c19_38] : memref<8x326xbf16, #tpu.memory_space<vmem>>, vector<8x288xbf16>
    tpu.vector_store %arg8[%c0_37, %c19_38], %93 {strides = array<i32>} : memref<8x326xbf16, #tpu.memory_space<vmem>>, vector<8x288xbf16>,
    %c0_39 = arith.constant 0 : index
    %c0_40 = arith.constant 0 : index
    %95 = vector.load %arg8[%c0_39, %c0_40] : memref<8x326xbf16, #tpu.memory_space<vmem>>, vector<8x326xbf16>
    %c3 = arith.constant 3 : index
    %c0_41 = arith.constant 0 : index
    %c0_42 = arith.constant 0 : index
    %96 = vector.load %arg6[%c3, %c0_41, %c0_42] : memref<4x8x1xf32, #tpu.memory_space<vmem>>, vector<1x8x1xf32>
    %97 = vector.shape_cast %96 : vector<1x8x1xf32> to vector<8x1xf32>
    %98 = vector.extract_strided_slice %95 {offsets = [0, 0], sizes = [8, 290], strides = [1, 1]} : vector<8x326xbf16> to vector<8x290xbf16>
    %99 = vector.extract_strided_slice %95 {offsets = [0, 18], sizes = [8, 290], strides = [1, 1]} : vector<8x326xbf16> to vector<8x290xbf16>
    %100 = vector.extract_strided_slice %95 {offsets = [0, 36], sizes = [8, 290], strides = [1, 1]} : vector<8x326xbf16> to vector<8x290xbf16>
    %101 = tpu.concatenate %98, %99, %100 in 0 : vector<8x290xbf16>, vector<8x290xbf16>, vector<8x290xbf16> -> vector<24x290xbf16>
    %c0_43 = arith.constant 0 : index
    %c0_44 = arith.constant 0 : index
    %102 = vector.load %arg5[%c0_43, %c0_44] : memref<24x24xbf16, #tpu.memory_space<vmem>>, vector<24x24xbf16>
    %cst_45 = arith.constant dense<0.000000e+00> : vector<24x290xf32>
    %103 = tpu.matmul %102, %101, %cst_45 {dimension_numbers = #tpu.dot_dimension_numbers<[1], [0], [0], [1], [0, 0, 1, 1], [], []>} : vector<24x24xbf16>, vector<24x290xbf16>, vector<24x290xf32> -> vector<24x290xf32>
    %104 = vector.extract_strided_slice %103 {offsets = [0, 0], sizes = [8, 288], strides = [1, 1]} : vector<24x290xf32> to vector<8x288xf32>
    %105 = vector.extract_strided_slice %103 {offsets = [8, 1], sizes = [8, 288], strides = [1, 1]} : vector<24x290xf32> to vector<8x288xf32>
    %106 = arith.addf %104, %105 : vector<8x288xf32>
    %107 = vector.extract_strided_slice %103 {offsets = [16, 2], sizes = [8, 288], strides = [1, 1]} : vector<24x290xf32> to vector<8x288xf32>
    %108 = arith.addf %106, %107 : vector<8x288xf32>
    %109 = vector.broadcast %97 : vector<8x1xf32> to vector<8x288xf32>
    %110 = arith.addf %108, %109 : vector<8x288xf32>
    %cst_46 = arith.constant 0.000000e+00 : f32
    %111 = vector.broadcast %cst_46 : f32 to vector<8x288xf32>
    %112 = arith.maximumf %110, %111 : vector<8x288xf32>
    %113 = arith.addf %112, %70 : vector<8x288xf32>
    %cst_47 = arith.constant 0.000000e+00 : f32
    %114 = vector.broadcast %cst_47 : f32 to vector<8x288xf32>
    %115 = arith.maximumf %113, %114 : vector<8x288xf32>
    %116 = vector.extract_strided_slice %115 {offsets = [0, 1], sizes = [8, 16], strides = [1, 1]} : vector<8x288xf32> to vector<8x16xf32>
    %c0_48 = arith.constant 0 : index
    %c0_49 = arith.constant 0 : index
    %c0_50 = arith.constant 0 : index
    %117 = vector.load %arg7[%c0_48, %c0_49, %c0_50] : memref<1x8x256xf32, #tpu.memory_space<vmem>>, vector<1x8x16xf32>
    %118 = vector.shape_cast %117 : vector<1x8x16xf32> to vector<8x16xf32>
    %119 = vector.shape_cast %116 : vector<8x16xf32> to vector<1x8x16xf32>
    tpu.vector_store %arg7[%c0_48, %c0_49, %c0_50], %119 {strides = array<i32>} : memref<1x8x256xf32, #tpu.memory_space<vmem>>, vector<1x8x16xf32>,
    %120 = vector.extract_strided_slice %115 {offsets = [0, 19], sizes = [8, 16], strides = [1, 1]} : vector<8x288xf32> to vector<8x16xf32>
    %c0_51 = arith.constant 0 : index
    %c0_52 = arith.constant 0 : index
    %c16 = arith.constant 16 : index
    %121 = vector.load %arg7[%c0_51, %c0_52, %c16] : memref<1x8x256xf32, #tpu.memory_space<vmem>>, vector<1x8x16xf32>
    %122 = vector.shape_cast %121 : vector<1x8x16xf32> to vector<8x16xf32>
    %123 = vector.shape_cast %120 : vector<8x16xf32> to vector<1x8x16xf32>
    tpu.vector_store %arg7[%c0_51, %c0_52, %c16], %123 {strides = array<i32>} : memref<1x8x256xf32, #tpu.memory_space<vmem>>, vector<1x8x16xf32>,
    %124 = vector.extract_strided_slice %115 {offsets = [0, 37], sizes = [8, 16], strides = [1, 1]} : vector<8x288xf32> to vector<8x16xf32>
    %c0_53 = arith.constant 0 : index
    %c0_54 = arith.constant 0 : index
    %c32 = arith.constant 32 : index
    %125 = vector.load %arg7[%c0_53, %c0_54, %c32] : memref<1x8x256xf32, #tpu.memory_space<vmem>>, vector<1x8x16xf32>
    %126 = vector.shape_cast %125 : vector<1x8x16xf32> to vector<8x16xf32>
    %127 = vector.shape_cast %124 : vector<8x16xf32> to vector<1x8x16xf32>
    tpu.vector_store %arg7[%c0_53, %c0_54, %c32], %127 {strides = array<i32>} : memref<1x8x256xf32, #tpu.memory_space<vmem>>, vector<1x8x16xf32>,
    %128 = vector.extract_strided_slice %115 {offsets = [0, 55], sizes = [8, 16], strides = [1, 1]} : vector<8x288xf32> to vector<8x16xf32>
    %c0_55 = arith.constant 0 : index
    %c0_56 = arith.constant 0 : index
    %c48 = arith.constant 48 : index
    %129 = vector.load %arg7[%c0_55, %c0_56, %c48] : memref<1x8x256xf32, #tpu.memory_space<vmem>>, vector<1x8x16xf32>
    %130 = vector.shape_cast %129 : vector<1x8x16xf32> to vector<8x16xf32>
    %131 = vector.shape_cast %128 : vector<8x16xf32> to vector<1x8x16xf32>
    tpu.vector_store %arg7[%c0_55, %c0_56, %c48], %131 {strides = array<i32>} : memref<1x8x256xf32, #tpu.memory_space<vmem>>, vector<1x8x16xf32>,
    %132 = vector.extract_strided_slice %115 {offsets = [0, 73], sizes = [8, 16], strides = [1, 1]} : vector<8x288xf32> to vector<8x16xf32>
    %c0_57 = arith.constant 0 : index
    %c0_58 = arith.constant 0 : index
    %c64 = arith.constant 64 : index
    %133 = vector.load %arg7[%c0_57, %c0_58, %c64] : memref<1x8x256xf32, #tpu.memory_space<vmem>>, vector<1x8x16xf32>
    %134 = vector.shape_cast %133 : vector<1x8x16xf32> to vector<8x16xf32>
    %135 = vector.shape_cast %132 : vector<8x16xf32> to vector<1x8x16xf32>
    tpu.vector_store %arg7[%c0_57, %c0_58, %c64], %135 {strides = array<i32>} : memref<1x8x256xf32, #tpu.memory_space<vmem>>, vector<1x8x16xf32>,
    %136 = vector.extract_strided_slice %115 {offsets = [0, 91], sizes = [8, 16], strides = [1, 1]} : vector<8x288xf32> to vector<8x16xf32>
    %c0_59 = arith.constant 0 : index
    %c0_60 = arith.constant 0 : index
    %c80 = arith.constant 80 : index
    %137 = vector.load %arg7[%c0_59, %c0_60, %c80] : memref<1x8x256xf32, #tpu.memory_space<vmem>>, vector<1x8x16xf32>
    %138 = vector.shape_cast %137 : vector<1x8x16xf32> to vector<8x16xf32>
    %139 = vector.shape_cast %136 : vector<8x16xf32> to vector<1x8x16xf32>
    tpu.vector_store %arg7[%c0_59, %c0_60, %c80], %139 {strides = array<i32>} : memref<1x8x256xf32, #tpu.memory_space<vmem>>, vector<1x8x16xf32>,
    %140 = vector.extract_strided_slice %115 {offsets = [0, 109], sizes = [8, 16], strides = [1, 1]} : vector<8x288xf32> to vector<8x16xf32>
    %c0_61 = arith.constant 0 : index
    %c0_62 = arith.constant 0 : index
    %c96 = arith.constant 96 : index
    %141 = vector.load %arg7[%c0_61, %c0_62, %c96] : memref<1x8x256xf32, #tpu.memory_space<vmem>>, vector<1x8x16xf32>
    %142 = vector.shape_cast %141 : vector<1x8x16xf32> to vector<8x16xf32>
    %143 = vector.shape_cast %140 : vector<8x16xf32> to vector<1x8x16xf32>
    tpu.vector_store %arg7[%c0_61, %c0_62, %c96], %143 {strides = array<i32>} : memref<1x8x256xf32, #tpu.memory_space<vmem>>, vector<1x8x16xf32>,
    %144 = vector.extract_strided_slice %115 {offsets = [0, 127], sizes = [8, 16], strides = [1, 1]} : vector<8x288xf32> to vector<8x16xf32>
    %c0_63 = arith.constant 0 : index
    %c0_64 = arith.constant 0 : index
    %c112 = arith.constant 112 : index
    %145 = vector.load %arg7[%c0_63, %c0_64, %c112] : memref<1x8x256xf32, #tpu.memory_space<vmem>>, vector<1x8x16xf32>
    %146 = vector.shape_cast %145 : vector<1x8x16xf32> to vector<8x16xf32>
    %147 = vector.shape_cast %144 : vector<8x16xf32> to vector<1x8x16xf32>
    tpu.vector_store %arg7[%c0_63, %c0_64, %c112], %147 {strides = array<i32>} : memref<1x8x256xf32, #tpu.memory_space<vmem>>, vector<1x8x16xf32>,
    %148 = vector.extract_strided_slice %115 {offsets = [0, 145], sizes = [8, 16], strides = [1, 1]} : vector<8x288xf32> to vector<8x16xf32>
    %c0_65 = arith.constant 0 : index
    %c0_66 = arith.constant 0 : index
    %c128 = arith.constant 128 : index
    %149 = vector.load %arg7[%c0_65, %c0_66, %c128] : memref<1x8x256xf32, #tpu.memory_space<vmem>>, vector<1x8x16xf32>
    %150 = vector.shape_cast %149 : vector<1x8x16xf32> to vector<8x16xf32>
    %151 = vector.shape_cast %148 : vector<8x16xf32> to vector<1x8x16xf32>
    tpu.vector_store %arg7[%c0_65, %c0_66, %c128], %151 {strides = array<i32>} : memref<1x8x256xf32, #tpu.memory_space<vmem>>, vector<1x8x16xf32>,
    %152 = vector.extract_strided_slice %115 {offsets = [0, 163], sizes = [8, 16], strides = [1, 1]} : vector<8x288xf32> to vector<8x16xf32>
    %c0_67 = arith.constant 0 : index
    %c0_68 = arith.constant 0 : index
    %c144 = arith.constant 144 : index
    %153 = vector.load %arg7[%c0_67, %c0_68, %c144] : memref<1x8x256xf32, #tpu.memory_space<vmem>>, vector<1x8x16xf32>
    %154 = vector.shape_cast %153 : vector<1x8x16xf32> to vector<8x16xf32>
    %155 = vector.shape_cast %152 : vector<8x16xf32> to vector<1x8x16xf32>
    tpu.vector_store %arg7[%c0_67, %c0_68, %c144], %155 {strides = array<i32>} : memref<1x8x256xf32, #tpu.memory_space<vmem>>, vector<1x8x16xf32>,
    %156 = vector.extract_strided_slice %115 {offsets = [0, 181], sizes = [8, 16], strides = [1, 1]} : vector<8x288xf32> to vector<8x16xf32>
    %c0_69 = arith.constant 0 : index
    %c0_70 = arith.constant 0 : index
    %c160 = arith.constant 160 : index
    %157 = vector.load %arg7[%c0_69, %c0_70, %c160] : memref<1x8x256xf32, #tpu.memory_space<vmem>>, vector<1x8x16xf32>
    %158 = vector.shape_cast %157 : vector<1x8x16xf32> to vector<8x16xf32>
    %159 = vector.shape_cast %156 : vector<8x16xf32> to vector<1x8x16xf32>
    tpu.vector_store %arg7[%c0_69, %c0_70, %c160], %159 {strides = array<i32>} : memref<1x8x256xf32, #tpu.memory_space<vmem>>, vector<1x8x16xf32>,
    %160 = vector.extract_strided_slice %115 {offsets = [0, 199], sizes = [8, 16], strides = [1, 1]} : vector<8x288xf32> to vector<8x16xf32>
    %c0_71 = arith.constant 0 : index
    %c0_72 = arith.constant 0 : index
    %c176 = arith.constant 176 : index
    %161 = vector.load %arg7[%c0_71, %c0_72, %c176] : memref<1x8x256xf32, #tpu.memory_space<vmem>>, vector<1x8x16xf32>
    %162 = vector.shape_cast %161 : vector<1x8x16xf32> to vector<8x16xf32>
    %163 = vector.shape_cast %160 : vector<8x16xf32> to vector<1x8x16xf32>
    tpu.vector_store %arg7[%c0_71, %c0_72, %c176], %163 {strides = array<i32>} : memref<1x8x256xf32, #tpu.memory_space<vmem>>, vector<1x8x16xf32>,
    %164 = vector.extract_strided_slice %115 {offsets = [0, 217], sizes = [8, 16], strides = [1, 1]} : vector<8x288xf32> to vector<8x16xf32>
    %c0_73 = arith.constant 0 : index
    %c0_74 = arith.constant 0 : index
    %c192 = arith.constant 192 : index
    %165 = vector.load %arg7[%c0_73, %c0_74, %c192] : memref<1x8x256xf32, #tpu.memory_space<vmem>>, vector<1x8x16xf32>
    %166 = vector.shape_cast %165 : vector<1x8x16xf32> to vector<8x16xf32>
    %167 = vector.shape_cast %164 : vector<8x16xf32> to vector<1x8x16xf32>
    tpu.vector_store %arg7[%c0_73, %c0_74, %c192], %167 {strides = array<i32>} : memref<1x8x256xf32, #tpu.memory_space<vmem>>, vector<1x8x16xf32>,
    %168 = vector.extract_strided_slice %115 {offsets = [0, 235], sizes = [8, 16], strides = [1, 1]} : vector<8x288xf32> to vector<8x16xf32>
    %c0_75 = arith.constant 0 : index
    %c0_76 = arith.constant 0 : index
    %c208 = arith.constant 208 : index
    %169 = vector.load %arg7[%c0_75, %c0_76, %c208] : memref<1x8x256xf32, #tpu.memory_space<vmem>>, vector<1x8x16xf32>
    %170 = vector.shape_cast %169 : vector<1x8x16xf32> to vector<8x16xf32>
    %171 = vector.shape_cast %168 : vector<8x16xf32> to vector<1x8x16xf32>
    tpu.vector_store %arg7[%c0_75, %c0_76, %c208], %171 {strides = array<i32>} : memref<1x8x256xf32, #tpu.memory_space<vmem>>, vector<1x8x16xf32>,
    %172 = vector.extract_strided_slice %115 {offsets = [0, 253], sizes = [8, 16], strides = [1, 1]} : vector<8x288xf32> to vector<8x16xf32>
    %c0_77 = arith.constant 0 : index
    %c0_78 = arith.constant 0 : index
    %c224 = arith.constant 224 : index
    %173 = vector.load %arg7[%c0_77, %c0_78, %c224] : memref<1x8x256xf32, #tpu.memory_space<vmem>>, vector<1x8x16xf32>
    %174 = vector.shape_cast %173 : vector<1x8x16xf32> to vector<8x16xf32>
    %175 = vector.shape_cast %172 : vector<8x16xf32> to vector<1x8x16xf32>
    tpu.vector_store %arg7[%c0_77, %c0_78, %c224], %175 {strides = array<i32>} : memref<1x8x256xf32, #tpu.memory_space<vmem>>, vector<1x8x16xf32>,
    %176 = vector.extract_strided_slice %115 {offsets = [0, 271], sizes = [8, 16], strides = [1, 1]} : vector<8x288xf32> to vector<8x16xf32>
    %c0_79 = arith.constant 0 : index
    %c0_80 = arith.constant 0 : index
    %c240 = arith.constant 240 : index
    %177 = vector.load %arg7[%c0_79, %c0_80, %c240] : memref<1x8x256xf32, #tpu.memory_space<vmem>>, vector<1x8x16xf32>
    %178 = vector.shape_cast %177 : vector<1x8x16xf32> to vector<8x16xf32>
    %179 = vector.shape_cast %176 : vector<8x16xf32> to vector<1x8x16xf32>
    tpu.vector_store %arg7[%c0_79, %c0_80, %c240], %179 {strides = array<i32>} : memref<1x8x256xf32, #tpu.memory_space<vmem>>, vector<1x8x16xf32>,
    return
  }
  func.func @transform_0(%arg0: i32) -> (i32, i32, i32) {
    %c0_i32 = arith.constant 0 : i32
    %c0_i32_0 = arith.constant 0 : i32
    %c0_i32_1 = arith.constant 0 : i32
    return %arg0, %c0_i32, %c0_i32_0 : i32, i32, i32
  }
  func.func @transform_1(%arg0: i32) -> (i32, i32) {
    %c0_i32 = arith.constant 0 : i32
    %c0_i32_0 = arith.constant 0 : i32
    %c0_i32_1 = arith.constant 0 : i32
    return %c0_i32, %c0_i32_0 : i32, i32
  }
  func.func @transform_2(%arg0: i32) -> (i32, i32) {
    %c0_i32 = arith.constant 0 : i32
    %c0_i32_0 = arith.constant 0 : i32
    %c0_i32_1 = arith.constant 0 : i32
    return %c0_i32, %c0_i32_0 : i32, i32
  }
  func.func @transform_3(%arg0: i32) -> (i32, i32) {
    %c0_i32 = arith.constant 0 : i32
    %c0_i32_0 = arith.constant 0 : i32
    %c0_i32_1 = arith.constant 0 : i32
    return %c0_i32, %c0_i32_0 : i32, i32
  }
  func.func @transform_4(%arg0: i32) -> (i32, i32) {
    %c0_i32 = arith.constant 0 : i32
    %c0_i32_0 = arith.constant 0 : i32
    %c0_i32_1 = arith.constant 0 : i32
    return %c0_i32, %c0_i32_0 : i32, i32
  }
  func.func @transform_5(%arg0: i32) -> (i32, i32, i32) {
    %c0_i32 = arith.constant 0 : i32
    %c0_i32_0 = arith.constant 0 : i32
    %c0_i32_1 = arith.constant 0 : i32
    %c0_i32_2 = arith.constant 0 : i32
    return %c0_i32, %c0_i32_0, %c0_i32_1 : i32, i32, i32
  }
  func.func @transform_6(%arg0: i32) -> (i32, i32, i32) {
    %c0_i32 = arith.constant 0 : i32
    %c0_i32_0 = arith.constant 0 : i32
    %c0_i32_1 = arith.constant 0 : i32
    return %arg0, %c0_i32, %c0_i32_0 : i32, i32, i32
  }
}

</mosaic_0001>

<llo_original>
// kernel: basic_block_forward.1
$region0: #{basic_block_forward.1}
  #allocation0 [shape = 'u32[]', space=smem, size = 0x4, offset = 0x4, fixed_abs, tag = 'smem constant byte address 0x4 - core index']
  #allocation1 [shape = 'u32[72,128]{1,0:T(1,128)}', space=vmem, size = 0x9000, scoped, tag = 'internal scratch']
  #allocation2 [shape = 'bf16[8,326]{1,0:T(8,128)(2,1)}', space=vmem, size = 0x1800, scoped, tag = 'scratch operand']
  %s0 = inlined_call_operand.vmem [shape: bf16[2,4,326], index: 0, kind: input, shape index: {}]
  %s1 = inlined_call_operand.vmem [shape: bf16[24,12], index: 1, kind: input, shape index: {}]
  %s2 = inlined_call_operand.vmem [shape: bf16[24,24], index: 2, kind: input, shape index: {}]
  %s3 = inlined_call_operand.vmem [shape: bf16[24,24], index: 3, kind: input, shape index: {}]
  %s4 = inlined_call_operand.vmem [shape: bf16[24,24], index: 4, kind: input, shape index: {}]
  %s5 = inlined_call_operand.vmem [shape: f32[4,8,1], index: 5, kind: input, shape index: {}]
  %s6 = inlined_call_operand.vmem [shape: f32[2,8,256], index: 6, kind: output, shape index: {}]
  %s7 = sld [smem:[#allocation0]]
  $region57: #{basic_block_forward.1} parent=0
    _
  %s9 = ssub.s32 1, %s7
  %s10 = scalar_select 0, %s9, %s7
  loop: start=0, step=1, limit=4
  $region2: #{basic_block_forward.1} parent=0 // loop_pre_header
    _
  $region3: #{basic_block_forward.1} parent=0 // loop_header
    %s12 = sphi 0, %s16
    %p13 = scmp.ge.s32.totalorder %s12, 4
    %s22 = sphi 0, %s24
    %s25 = sphi 0, %s22
    %s26 = sphi 0, %s25
    %s42 = sphi 0, %s26
    %s46 = sphi 0, %s46
    %s48 = sphi 0, %s46
    %s49 = sphi 0, %s48
    %s63 = sphi 0, %s49
    %s67 = sphi 0, %s67
    %s69 = sphi 0, %s67
    %s70 = sphi 0, %s69
    %s84 = sphi 0, %s70
    %s88 = sphi 0, %s88
    %s90 = sphi 0, %s88
    %s91 = sphi 0, %s90
    %s105 = sphi 0, %s91
    %s109 = sphi 0, %s109
    %s111 = sphi 0, %s109
    %s112 = sphi 0, %s111
    %s126 = sphi 0, %s112
    %s130 = sphi 0, %s130
    %s132 = sphi 0, %s130
    %s133 = sphi 0, %s132
    %s147 = sphi 0, %s133
    %s153 = sphi 0, %s155
    %s156 = sphi 0, %s153
    %s157 = sphi 0, %s156
    %s173 = sphi 0, %s157
  $region4: #{basic_block_forward.1} parent=0 // loop_header_branch
    %15 = sbr.rel (%p13) target = $region8
  $region5: #{basic_block_forward.1} parent=0 // loop_body
    %s17 = ssub.s32 %s12, 1
    %s18 = ssub.s32 %s12, 2
    %s19 = sadd.s32 %s12, 1
    %s20 = ssub.s32 %s12, %s19
    %p21 = scmp.eq.s32.totalorder %s20, 0
    %s23 = sadd.s32 %s22, 1
    %s24 = scalar_select %p21, %s22, %s23
    %p27 = pneg %p21
    %p28 = scmp.eq.s32.totalorder %s12, 1
    %p29 = por %p27, %p28
    %p30 = scmp.ne.s32.totalorder %s22, %s25
    %p31 = scmp.eq.s32.totalorder %s12, 0
    %p32 = por %p30, %p31
    %p33 = scmp.ne.s32.totalorder %s22, %s25
    %p34 = scmp.eq.s32.totalorder %s17, 1
    %p35 = por %p33, %p34
    %p36 = scmp.ne.s32.totalorder %s25, %s26
    %p37 = scmp.eq.s32.totalorder %s17, 0
    %p38 = por %p36, %p37
    %p39 = scmp.ne.s32.totalorder %s25, %s26
    %p40 = scmp.eq.s32.totalorder %s18, 1
    %p41 = por %p39, %p40
    %p43 = scmp.ne.s32.totalorder %s26, %s42
    %p44 = scmp.eq.s32.totalorder %s18, 0
    %p45 = por %p43, %p44
    %s47 = sadd.s32 %s46, 1
    %p50 = scmp.eq.s32.totalorder %s12, 1
    %p51 = scmp.ne.s32.totalorder %s46, %s48
    %p52 = scmp.eq.s32.totalorder %s12, 0
    %p53 = por %p51, %p52
    %p54 = scmp.ne.s32.totalorder %s46, %s48
    %p55 = scmp.eq.s32.totalorder %s17, 1
    %p56 = por %p54, %p55
    %p57 = scmp.ne.s32.totalorder %s48, %s49
    %p58 = scmp.eq.s32.totalorder %s17, 0
    %p59 = por %p57, %p58
    %p60 = scmp.ne.s32.totalorder %s48, %s49
    %p61 = scmp.eq.s32.totalorder %s18, 1
    %p62 = por %p60, %p61
    %p64 = scmp.ne.s32.totalorder %s49, %s63
    %p65 = scmp.eq.s32.totalorder %s18, 0
    %p66 = por %p64, %p65
    %s68 = sadd.s32 %s67, 1
    %p71 = scmp.eq.s32.totalorder %s12, 1
    %p72 = scmp.ne.s32.totalorder %s67, %s69
    %p73 = scmp.eq.s32.totalorder %s12, 0
    %p74 = por %p72, %p73
    %p75 = scmp.ne.s32.totalorder %s67, %s69
    %p76 = scmp.eq.s32.totalorder %s17, 1
    %p77 = por %p75, %p76
    %p78 = scmp.ne.s32.totalorder %s69, %s70
    %p79 = scmp.eq.s32.totalorder %s17, 0
    %p80 = por %p78, %p79
    %p81 = scmp.ne.s32.totalorder %s69, %s70
    %p82 = scmp.eq.s32.totalorder %s18, 1
    %p83 = por %p81, %p82
    %p85 = scmp.ne.s32.totalorder %s70, %s84
    %p86 = scmp.eq.s32.totalorder %s18, 0
    %p87 = por %p85, %p86
    %s89 = sadd.s32 %s88, 1
    %p92 = scmp.eq.s32.totalorder %s12, 1
    %p93 = scmp.ne.s32.totalorder %s88, %s90
    %p94 = scmp.eq.s32.totalorder %s12, 0
    %p95 = por %p93, %p94
    %p96 = scmp.ne.s32.totalorder %s88, %s90
    %p97 = scmp.eq.s32.totalorder %s17, 1
    %p98 = por %p96, %p97
    %p99 = scmp.ne.s32.totalorder %s90, %s91
    %p100 = scmp.eq.s32.totalorder %s17, 0
    %p101 = por %p99, %p100
    %p102 = scmp.ne.s32.totalorder %s90, %s91
    %p103 = scmp.eq.s32.totalorder %s18, 1
    %p104 = por %p102, %p103
    %p106 = scmp.ne.s32.totalorder %s91, %s105
    %p107 = scmp.eq.s32.totalorder %s18, 0
    %p108 = por %p106, %p107
    %s110 = sadd.s32 %s109, 1
    %p113 = scmp.eq.s32.totalorder %s12, 1
    %p114 = scmp.ne.s32.totalorder %s109, %s111
    %p115 = scmp.eq.s32.totalorder %s12, 0
    %p116 = por %p114, %p115
    %p117 = scmp.ne.s32.totalorder %s109, %s111
    %p118 = scmp.eq.s32.totalorder %s17, 1
    %p119 = por %p117, %p118
    %p120 = scmp.ne.s32.totalorder %s111, %s112
    %p121 = scmp.eq.s32.totalorder %s17, 0
    %p122 = por %p120, %p121
    %p123 = scmp.ne.s32.totalorder %s111, %s112
    %p124 = scmp.eq.s32.totalorder %s18, 1
    %p125 = por %p123, %p124
    %p127 = scmp.ne.s32.totalorder %s112, %s126
    %p128 = scmp.eq.s32.totalorder %s18, 0
    %p129 = por %p127, %p128
    %s131 = sadd.s32 %s130, 1
    %p134 = scmp.eq.s32.totalorder %s12, 1
    %p135 = scmp.ne.s32.totalorder %s130, %s132
    %p136 = scmp.eq.s32.totalorder %s12, 0
    %p137 = por %p135, %p136
    %p138 = scmp.ne.s32.totalorder %s130, %s132
    %p139 = scmp.eq.s32.totalorder %s17, 1
    %p140 = por %p138, %p139
    %p141 = scmp.ne.s32.totalorder %s132, %s133
    %p142 = scmp.eq.s32.totalorder %s17, 0
    %p143 = por %p141, %p142
    %p144 = scmp.ne.s32.totalorder %s132, %s133
    %p145 = scmp.eq.s32.totalorder %s18, 1
    %p146 = por %p144, %p145
    %p148 = scmp.ne.s32.totalorder %s133, %s147
    %p149 = scmp.eq.s32.totalorder %s18, 0
    %p150 = por %p148, %p149
    %s151 = ssub.s32 %s12, %s19
    %p152 = scmp.eq.s32.totalorder %s151, 0
    %s154 = sadd.s32 %s153, 1
    %s155 = scalar_select %p152, %s153, %s154
    %p158 = pneg %p152
    %p159 = scmp.eq.s32.totalorder %s12, 1
    %p160 = por %p158, %p159
    %p161 = scmp.ne.s32.totalorder %s153, %s156
    %p162 = scmp.eq.s32.totalorder %s12, 0
    %p163 = por %p161, %p162
    %p164 = scmp.ne.s32.totalorder %s153, %s156
    %p165 = scmp.eq.s32.totalorder %s17, 1
    %p166 = por %p164, %p165
    %p167 = scmp.ne.s32.totalorder %s156, %s157
    %p168 = scmp.eq.s32.totalorder %s17, 0
    %p169 = por %p167, %p168
    %p170 = scmp.ne.s32.totalorder %s156, %s157
    %p171 = scmp.eq.s32.totalorder %s18, 1
    %p172 = por %p170, %p171
    %p174 = scmp.ne.s32.totalorder %s157, %s173
    %p175 = scmp.eq.s32.totalorder %s18, 0
    %p176 = por %p174, %p175
    %p177 = scmp.le.s32.totalorder 1, %s12
    %p178 = scmp.lt.s32.totalorder %s12, 3
    %p179 = pnand %p177, %p178
    %p180 = pneg %p179
    // Predicated region
    $region9: #{basic_block_forward.1} parent=5 // pred_check
      _
    $region10: #{basic_block_forward.1} parent=5 // pred_check_branch
      %182 = sbr.rel (%p179) target = $region12
    $region11: #{basic_block_forward.1} parent=5 // pred_region
      %s183 = ssub.s32 %s12, 1
      // Predicated region
      $region13: #{basic_block_forward.1} parent=11 // pred_check
        %p184 = pneg %p59
      $region14: #{basic_block_forward.1} parent=11 // pred_check_branch
        %186 = sbr.rel (%p184) target = $region16
      $region15: #{basic_block_forward.1} parent=11 // pred_region
        _
      $region16: #{basic_block_forward.1} parent=11 // pred_fallthru
        _
      // Predicated region
      $region17: #{basic_block_forward.1} parent=11 // pred_check
        %p187 = pneg %p80
      $region18: #{basic_block_forward.1} parent=11 // pred_check_branch
        %189 = sbr.rel (%p187) target = $region20
      $region19: #{basic_block_forward.1} parent=11 // pred_region
        _
      $region20: #{basic_block_forward.1} parent=11 // pred_fallthru
        _
      // Predicated region
      $region21: #{basic_block_forward.1} parent=11 // pred_check
        %p190 = pneg %p101
      $region22: #{basic_block_forward.1} parent=11 // pred_check_branch
        %192 = sbr.rel (%p190) target = $region24
      $region23: #{basic_block_forward.1} parent=11 // pred_region
        _
      $region24: #{basic_block_forward.1} parent=11 // pred_fallthru
        _
      // Predicated region
      $region25: #{basic_block_forward.1} parent=11 // pred_check
        %p193 = pneg %p122
      $region26: #{basic_block_forward.1} parent=11 // pred_check_branch
        %195 = sbr.rel (%p193) target = $region28
      $region27: #{basic_block_forward.1} parent=11 // pred_region
        _
      $region28: #{basic_block_forward.1} parent=11 // pred_fallthru
        _
      // Predicated region
      $region29: #{basic_block_forward.1} parent=11 // pred_check
        %p196 = pneg %p143
      $region30: #{basic_block_forward.1} parent=11 // pred_check_branch
        %198 = sbr.rel (%p196) target = $region32
      $region31: #{basic_block_forward.1} parent=11 // pred_region
        _
      $region32: #{basic_block_forward.1} parent=11 // pred_fallthru
        _
    $region12: #{basic_block_forward.1} parent=5 // pred_fallthru
      _
    %p199 = scmp.lt.s32.totalorder %s12, 2
    // Predicated region
    $region33: #{basic_block_forward.1} parent=5 // pred_check
      %p200 = pneg %p199
    $region34: #{basic_block_forward.1} parent=5 // pred_check_branch
      %202 = sbr.rel (%p200) target = $region36
    $region35: #{basic_block_forward.1} parent=5 // pred_region
      // Predicated region
      $region37: #{basic_block_forward.1} parent=35 // pred_check
        %p203 = pneg %p32
      $region38: #{basic_block_forward.1} parent=35 // pred_check_branch
        %205 = sbr.rel (%p203) target = $region40
      $region39: #{basic_block_forward.1} parent=35 // pred_region
        %p206 = scmp.lt.s32.totalorder %s12, 1
        %s207 = scalar_select %p206, %s12, 1
        %s208 = smul.addr %s207, 3
        %s209 = smul.addr %s208, 2
        %s210 = scalar_lea.vmem %s0, %s209
      $region40: #{basic_block_forward.1} parent=35 // pred_fallthru
        _
    $region36: #{basic_block_forward.1} parent=5 // pred_fallthru
      _
    %p211 = scmp.le.s32.totalorder 1, %s12
    %p212 = scmp.lt.s32.totalorder %s12, 3
    %p213 = pnand %p211, %p212
    %p214 = pneg %p213
    // Predicated region
    $region41: #{basic_block_forward.1} parent=5 // pred_check
      _
    $region42: #{basic_block_forward.1} parent=5 // pred_check_branch
      %216 = sbr.rel (%p213) target = $region44
    $region43: #{basic_block_forward.1} parent=5 // pred_region
      %s217 = ssub.s32 %s12, 1
      %p218 = scmp.lt.s32.totalorder %s17, 1
      %s219 = scalar_select %p218, %s17, 1
      %s220 = smul.addr %s219, 3
      %s221 = smul.addr %s220, 2
      %s222 = scalar_lea.vmem %s0, %s221
      %p223 = pneg %p38
      %p224 = pneg %p35
      %p225 = pneg %p59
      %p226 = pneg %p56
      %p227 = pneg %p80
      %p228 = pneg %p77
      %p229 = pneg %p101
      %p230 = pneg %p98
      %p231 = pneg %p122
      %p232 = pneg %p119
      %p233 = pneg %p143
      %p234 = pneg %p140
      %p235 = pneg %p169
      %p236 = pneg %p166
      %p237 = scmp.lt.s32.totalorder %s17, 1
      %s238 = scalar_select %p237, %s17, 1
      %s239 = smul.addr %s238, 2
      %s240 = smul.addr %s239, 8
      %s241 = scalar_lea.vmem %s6, %s240
      %p242 = scmp.lt.s32.totalorder %s17, 1
      %s243 = scalar_select %p242, %s17, 1
      %s244 = smul.addr %s243, 3
      %s245 = smul.addr %s244, 2
      %s246 = scalar_lea.vmem %s0, %s245
      %p247 = scmp.lt.s32.totalorder %s17, 1
      %s248 = scalar_select %p247, %s17, 1
      %s249 = smul.addr %s248, 2
      %s250 = smul.addr %s249, 8
      %s251 = scalar_lea.vmem %s6, %s250
      %v253 = vlaneseq
      %v254 = vand.u32 %v253, 127
      %v255 = vadd.s32 %v254, 128
      %v256 = vadd.s32 %v254, 256
      %vm257 = vcmp.lt.s32.totalorder %v254, 0
      %v258 = vsub.s32 0, %v254
      %v259 = vsel %vm257, %v258, %v254
      %v260 = vand.u32 %v259, 65535
      %v261 = vshrl.u32 %v259, 16
      %v263 = vmul.u32 %v260, 14564
      %v264 = vmul.u32 %v260, 58254
      %v265 = vmul.u32 %v261, 14564
      %v266 = vmul.u32 %v261, 58254
      %v267 = vshll.u32 %v264, 16
      %v268 = vshrl.u32 %v264, 16
      %v269 = vshll.u32 %v265, 16
      %v270 = vshrl.u32 %v265, 16
      %vm271 = vc.u32 %v263, %v267
      %v272 = vsel %vm271, 1, 0
      %v273 = vadd.s32 %v263, %v267
      %v274 = vadd.s32 %v266, %v272
      %vm275 = vc.u32 %v273, %v269
      %v276 = vsel %vm275, 1, 0
      %v277 = vadd.s32 %v273, %v269
      %v278 = vadd.s32 %v274, %v276
      %v279 = vadd.s32 %v278, %v268
      %v280 = vadd.s32 %v279, %v270
      %v281 = vshrl.u32 %v280, 4
      %v282 = vmul.u32 %v281, 18
      %v283 = vsub.s32 %v259, %v282
      %v284 = vsub.s32 0, %v283
      %v285 = vsel %vm257, %v284, %v283
      %vm286 = vcmp.lt.s32.totalorder %v255, 0
      %v287 = vsub.s32 0, %v255
      %v288 = vsel %vm286, %v287, %v255
      %v289 = vand.u32 %v288, 65535
      %v290 = vshrl.u32 %v288, 16
      %v292 = vmul.u32 %v289, 14564
      %v293 = vmul.u32 %v289, 58254
      %v294 = vmul.u32 %v290, 14564
      %v295 = vmul.u32 %v290, 58254
      %v296 = vshll.u32 %v293, 16
      %v297 = vshrl.u32 %v293, 16
      %v298 = vshll.u32 %v294, 16
      %v299 = vshrl.u32 %v294, 16
      %vm300 = vc.u32 %v292, %v296
      %v301 = vsel %vm300, 1, 0
      %v302 = vadd.s32 %v292, %v296
      %v303 = vadd.s32 %v295, %v301
      %vm304 = vc.u32 %v302, %v298
      %v305 = vsel %vm304, 1, 0
      %v306 = vadd.s32 %v302, %v298
      %v307 = vadd.s32 %v303, %v305
      %v308 = vadd.s32 %v307, %v297
      %v309 = vadd.s32 %v308, %v299
      %v310 = vshrl.u32 %v309, 4
      %v311 = vmul.u32 %v310, 18
      %v312 = vsub.s32 %v288, %v311
      %v313 = vsub.s32 0, %v312
      %v314 = vsel %vm286, %v313, %v312
      %vm315 = vcmp.lt.s32.totalorder %v256, 0
      %v316 = vsub.s32 0, %v256
      %v317 = vsel %vm315, %v316, %v256
      %v318 = vand.u32 %v317, 65535
      %v319 = vshrl.u32 %v317, 16
      %v321 = vmul.u32 %v318, 14564
      %v322 = vmul.u32 %v318, 58254
      %v323 = vmul.u32 %v319, 14564
      %v324 = vmul.u32 %v319, 58254
      %v325 = vshll.u32 %v322, 16
      %v326 = vshrl.u32 %v322, 16
      %v327 = vshll.u32 %v323, 16
      %v328 = vshrl.u32 %v323, 16
      %vm329 = vc.u32 %v321, %v325
      %v330 = vsel %vm329, 1, 0
      %v331 = vadd.s32 %v321, %v325
      %v332 = vadd.s32 %v324, %v330
      %vm333 = vc.u32 %v331, %v327
      %v334 = vsel %vm333, 1, 0
      %v335 = vadd.s32 %v331, %v327
      %v336 = vadd.s32 %v332, %v334
      %v337 = vadd.s32 %v336, %v326
      %v338 = vadd.s32 %v337, %v328
      %v339 = vshrl.u32 %v338, 4
      %v340 = vmul.u32 %v339, 18
      %v341 = vsub.s32 %v317, %v340
      %v342 = vsub.s32 0, %v341
      %v343 = vsel %vm315, %v342, %v341
      %vm344 = vcmp.ne.s32.totalorder %v285, 0
      %vm345 = vcmp.ne.s32.totalorder %v314, 0
      %vm346 = vcmp.ne.s32.totalorder %v343, 0
      %vm347 = vcmp.lt.s32.totalorder %v285, 0
      %vm348 = vcmp.lt.s32.totalorder %v314, 0
      %vm349 = vcmp.lt.s32.totalorder %v343, 0
      %vm350 = vmand %vm347, %vm344
      %vm351 = vmand %vm348, %vm345
      %vm352 = vmand %vm349, %vm346
      %v353 = vadd.s32 %v285, 18
      %v354 = vadd.s32 %v314, 18
      %v355 = vadd.s32 %v343, 18
      %v356 = vsel %vm350, %v353, %v285
      %v357 = vsel %vm351, %v354, %v314
      %v358 = vsel %vm352, %v355, %v343
      %vm359 = vcmp.eq.s32.totalorder %v356, 0
      %vm360 = vcmp.eq.s32.totalorder %v357, 0
      %vm361 = vcmp.eq.s32.totalorder %v358, 0
      %vm362 = vcmp.eq.s32.totalorder %v356, 17
      %vm363 = vcmp.eq.s32.totalorder %v357, 17
      %vm364 = vcmp.eq.s32.totalorder %v358, 17
      %vm365 = vmor %vm359, %vm362
      %vm366 = vmor %vm360, %vm363
      %vm367 = vmor %vm361, %vm364
      %v368 = vsel %vm365, 0.0, 1.0
      %v369 = vsel %vm366, 0.0, 1.0
      %v370 = vsel %vm367, 0.0, 1.0
      %vm371 = vcmask 150528
      %372 = vst.msk [vmem:[#allocation2] sm:$0xf] %vm371, 0
      %vm373 = vcmask 568728
      %374 = vst.msk [vmem:[#allocation2 + $0x8] sm:$0xf] %vm373, 0
      %v375 = vld [vmem:[%s246] sm:$0x3f]
      %v376 = vld [vmem:[%s5] sm:$0xff]
      %378 = vst [vmem:[#allocation1] ss:$4 sm:$0xff] %v375
      %v379 = vld.sshfl [vmem:[#allocation1] sm:$0xff pattern:$0x73625140]
      %v380 = vld.sshfl [vmem:[#allocation1 + $0x8] sm:$0xff pattern:$0x73625140]
      %v381 = vld.sshfl [vmem:[#allocation1 + $0x10] sm:$0xff pattern:$0x73625140]
      %s382 = scalar_lea.vmem [#allocation1], 1
      %383 = vst [vmem:[%s382] ss:$4 sm:$0xff] %v375
      %v384 = vld.sshfl [vmem:[#allocation1] sm:$0xff pattern:$0x73625140]
      %v386 = vld.sshfl [vmem:[#allocation1 + $0x8] sm:$0xff pattern:$0x73625140]
      %v388 = vld.sshfl [vmem:[#allocation1 + $0x10] sm:$0xff pattern:$0x73625140]
      %390 = vrot.lane.b32.xlu0 %v384, 110
      %v391 = vpop.permute.xlu0 %390
      %392 = vrot.lane.b32.xlu0 %v386, 110
      %v393 = vpop.permute.xlu0 %392
      %394 = vrot.lane.b32.xlu0 %v388, 110
      %v395 = vpop.permute.xlu0 %394
      %vm396 = vcmask 900096
      %v397 = vsel %vm396, %v391, %v393
      %v398 = vsel %vm396, %v393, %v395
      %s399 = scalar_lea.vmem [#allocation1], 2
      %400 = vst [vmem:[%s399] ss:$4 sm:$0xff] %v375
      %v401 = vld.sshfl [vmem:[#allocation1] sm:$0xff pattern:$0x73625140]
      %v403 = vld.sshfl [vmem:[#allocation1 + $0x8] sm:$0xff pattern:$0x73625140]
      %v405 = vld.sshfl [vmem:[#allocation1 + $0x10] sm:$0xff pattern:$0x73625140]
      %407 = vrot.lane.b32.xlu0 %v401, 92
      %v408 = vpop.permute.xlu0 %407
      %409 = vrot.lane.b32.xlu0 %v403, 92
      %v410 = vpop.permute.xlu0 %409
      %411 = vrot.lane.b32.xlu0 %v405, 92
      %v412 = vpop.permute.xlu0 %411
      %vm413 = vcmask 752640
      %v414 = vsel %vm413, %v408, %v410
      %v415 = vsel %vm413, %v410, %v412
      %vm416 = vcmask 1041408
      %v418 = vsel %vm416, %v379, %v397
      %v420 = vsel %vm416, %v380, %v398
      %v422 = vsel %vm416, %v381, %v395
      %vm423 = vcmask 1043456
      %v425 = vsel %vm423, %v418, %v414
      %v427 = vsel %vm423, %v420, %v415
      %v429 = vsel %vm423, %v422, %v412
      %v430 = vld [vmem:[%s1] sm:$0xf]
      %v431 = vld [vmem:[%s1 + $0x4] sm:$0xf]
      %v432 = vld [vmem:[%s1 + $0x8] sm:$0xf]
      %v436 = vunpack.c.l.b16 %v430
      %v437 = vunpack.c.l.b16 %v431
      %v438 = vunpack.c.l.b16 %v432
      %v439 = vpack.c.b16 %v437, %v436
      %v440 = vpack.c.b16 %v438, %v438
      %vm441 = vcmask 97280
      %v443 = vsel %vm441, %v439, 0
      %v446 = vsel %vm441, %v440, 0
      %vm448 = vcmask 1045504
      %v449 = vsel %vm448, %v425, 0
      %v451 = vsel %vm448, %v427, 0
      %v453 = vsel %vm448, %v429, 0
      %455 = vmatpush.bf16.msra.mxu0 0
      %456 = vmatpush.bf16.msra.mxu0 0
      %457 = vmatpush.bf16.msra.mxu0 0
      %458 = vmatpush.bf16.msra.mxu0 0
      %459 = vmatpush.bf16.msra.mxu0 0
      %460 = vmatpush.bf16.msra.mxu0 0
      %461 = vmatpush.bf16.msra.mxu0 0
      %462 = vmatpush.bf16.msra.mxu0 %v449
      %463 = vmatmul.bf16.gmra.mxu0 %v443
      %v464 = vpop.f32.mrf.mxu0
      %v465 = vadd.f32 0.0, %v464
      %v466 = vpop.f32.mrf.mxu0
      %v467 = vadd.f32 0.0, %v466
      %468 = vmatmul.bf16.gmra.mxu0 %v446
      %v469 = vpop.f32.mrf.mxu0
      %v470 = vadd.f32 0.0, %v469
      %v471 = vpop.f32.mrf.mxu0
      %472 = vdwg.mxu0
      %473 = vmatpush.bf16.msra.mxu0 0
      %474 = vmatpush.bf16.msra.mxu0 0
      %475 = vmatpush.bf16.msra.mxu0 0
      %476 = vmatpush.bf16.msra.mxu0 0
      %477 = vmatpush.bf16.msra.mxu0 0
      %478 = vmatpush.bf16.msra.mxu0 0
      %479 = vmatpush.bf16.msra.mxu0 0
      %480 = vmatpush.bf16.msra.mxu0 %v451
      %481 = vmatmul.bf16.gmra.mxu0 %v443
      %v482 = vpop.f32.mrf.mxu0
      %v483 = vadd.f32 0.0, %v482
      %v484 = vpop.f32.mrf.mxu0
      %v485 = vadd.f32 0.0, %v484
      %486 = vmatmul.bf16.gmra.mxu0 %v446
      %v487 = vpop.f32.mrf.mxu0
      %v488 = vadd.f32 0.0, %v487
      %v489 = vpop.f32.mrf.mxu0
      %490 = vdwg.mxu0
      %491 = vmatpush.bf16.msra.mxu0 0
      %492 = vmatpush.bf16.msra.mxu0 0
      %493 = vmatpush.bf16.msra.mxu0 0
      %494 = vmatpush.bf16.msra.mxu0 0
      %495 = vmatpush.bf16.msra.mxu0 0
      %496 = vmatpush.bf16.msra.mxu0 0
      %497 = vmatpush.bf16.msra.mxu0 0
      %498 = vmatpush.bf16.msra.mxu0 %v453
      %499 = vmatmul.bf16.gmra.mxu0 %v443
      %v500 = vpop.f32.mrf.mxu0
      %v501 = vadd.f32 0.0, %v500
      %v502 = vpop.f32.mrf.mxu0
      %v503 = vadd.f32 0.0, %v502
      %504 = vmatmul.bf16.gmra.mxu0 %v446
      %v505 = vpop.f32.mrf.mxu0
      %v506 = vadd.f32 0.0, %v505
      %v507 = vpop.f32.mrf.mxu0
      %508 = vdwg.mxu0
      %512 = vrot.lane.b32.xlu0 %v467, 127
      %v513 = vpop.permute.xlu0 %512
      %514 = vrot.lane.b32.xlu0 %v485, 127
      %v515 = vpop.permute.xlu0 %514
      %516 = vrot.lane.b32.xlu0 %v503, 127
      %v517 = vpop.permute.xlu0 %516
      %vm518 = vcmask 1039360
      %v519 = vsel %vm518, %v513, %v515
      %v520 = vsel %vm518, %v515, %v517
      %v524 = vadd.f32 %v465, %v519
      %v525 = vadd.f32 %v483, %v520
      %v526 = vadd.f32 %v501, %v517
      %530 = vrot.lane.b32.xlu0 %v470, 126
      %v531 = vpop.permute.xlu0 %530
      %532 = vrot.lane.b32.xlu0 %v488, 126
      %v533 = vpop.permute.xlu0 %532
      %534 = vrot.lane.b32.xlu0 %v506, 126
      %v535 = vpop.permute.xlu0 %534
      %vm536 = vcmask 1031168
      %v537 = vsel %vm536, %v531, %v533
      %v538 = vsel %vm536, %v533, %v535
      %v542 = vadd.f32 %v524, %v537
      %v543 = vadd.f32 %v525, %v538
      %v544 = vadd.f32 %v526, %v535
      %546 = vset.pattern.permute.xlu0 0
      %547 = vperm.xlu0 %546, %v376
      %v548 = vpop.permute.xlu0 %547
      %v550 = vadd.f32 %v542, %v548
      %v551 = vadd.f32 %v543, %v548
      %v552 = vadd.f32 %v544, %v548
      %v553 = vmax.f32 %v550, 0.0
      %v554 = vmax.f32 %v551, 0.0
      %v555 = vmax.f32 %v552, 0.0
      %v556 = vmul.f32 %v553, %v368
      %v557 = vmul.f32 %v554, %v369
      %v558 = vmul.f32 %v555, %v370
      %v559 = vpack.c.bf16 %v557, %v556
      %v560 = vpack.c.bf16 %v558, %v558
      %563 = vrot.lane.b32.xlu0 %v559, 19
      %v564 = vpop.permute.xlu0 %563
      %565 = vrot.lane.b32.xlu0 %v560, 19
      %v566 = vpop.permute.xlu0 %565
      %v567 = vrot.slane %v564, 4
      %vm568 = vcmask 154624
      %v569 = vsel %vm568, %v567, %v564
      %v570 = vsel %vm568, %v567, %v566
      %vm573 = vcmask 1043608
      %vm574 = vcmask 1047556
      %vm575 = vmor %vm574, %vm573
      %576 = vst.msk [vmem:[#allocation2] sm:$0xff] %vm575, %v569
      %vm577 = vcmask 412672
      %578 = vst.msk [vmem:[#allocation2 + $0x8] sm:$0xf] %vm577, %v570
      %v579 = vld [vmem:[#allocation2] sm:$0xff]
      %v580 = vld [vmem:[#allocation2 + $0x8] sm:$0xf]
      %s581 = scalar_lea.vmem %s5, 8
      %v582 = vld [vmem:[%s581] sm:$0xff]
      %v585 = vunpack.c.l.b16 %v579
      %v586 = vunpack.c.h.b16 %v579
      %v587 = vunpack.c.l.b16 %v580
      %v588 = vpack.c.b16 %v585, %v585
      %v589 = vpack.c.b16 %v586, %v586
      %v590 = vpack.c.b16 %v587, %v587
      %591 = vrot.lane.b32.xlu0 %v588, 110
      %v592 = vpop.permute.xlu0 %591
      %593 = vrot.lane.b32.xlu0 %v589, 110
      %v594 = vpop.permute.xlu0 %593
      %595 = vrot.lane.b32.xlu0 %v590, 110
      %v596 = vpop.permute.xlu0 %595
      %v597 = vsel %vm396, %v592, %v594
      %v598 = vsel %vm396, %v594, %v596
      %599 = vrot.lane.b32.xlu0 %v588, 92
      %v600 = vpop.permute.xlu0 %599
      %601 = vrot.lane.b32.xlu0 %v589, 92
      %v602 = vpop.permute.xlu0 %601
      %603 = vrot.lane.b32.xlu0 %v590, 92
      %v604 = vpop.permute.xlu0 %603
      %v605 = vsel %vm413, %v600, %v602
      %v606 = vsel %vm413, %v602, %v604
      %v609 = vsel %vm423, %v588, %v597
      %v613 = vsel %vm423, %v589, %v598
      %v617 = vsel %vm423, %v590, %v596
      %v619 = vld [vmem:[%s2] sm:$0xf]
      %v620 = vld [vmem:[%s2 + $0x4] sm:$0xf]
      %v621 = vld [vmem:[%s2 + $0x8] sm:$0xf]
      %v625 = vunpack.c.l.b16 %v619
      %v626 = vunpack.c.l.b16 %v620
      %v627 = vunpack.c.l.b16 %v621
      %v628 = vpack.c.b16 %v626, %v625
      %v629 = vpack.c.b16 %v627, %v627
      %vm630 = vcmask 195584
      %v632 = vsel %vm630, %v628, 0
      %v635 = vsel %vm630, %v629, 0
      %v638 = vsel %vm423, %v605, 0
      %v641 = vsel %vm423, %v606, 0
      %v644 = vsel %vm423, %v604, 0
      %646 = vmatpush.bf16.msra.mxu0 0
      %647 = vmatpush.bf16.msra.mxu0 0
      %648 = vmatpush.bf16.msra.mxu0 0
      %649 = vmatpush.bf16.msra.mxu0 0
      %650 = vmatpush.bf16.msra.mxu0 0
      %651 = vmatpush.bf16.msra.mxu0 0
      %652 = vmatpush.bf16.msra.mxu0 %v638
      %653 = vmatpush.bf16.msra.mxu0 %v609
      %654 = vmatmul.bf16.gmra.mxu0 %v632
      %v655 = vpop.f32.mrf.mxu0
      %v656 = vadd.f32 0.0, %v655
      %v657 = vpop.f32.mrf.mxu0
      %v658 = vadd.f32 0.0, %v657
      %659 = vmatmul.bf16.gmra.mxu0 %v635
      %v660 = vpop.f32.mrf.mxu0
      %v661 = vadd.f32 0.0, %v660
      %v662 = vpop.f32.mrf.mxu0
      %663 = vdwg.mxu0
      %664 = vmatpush.bf16.msra.mxu0 0
      %665 = vmatpush.bf16.msra.mxu0 0
      %666 = vmatpush.bf16.msra.mxu0 0
      %667 = vmatpush.bf16.msra.mxu0 0
      %668 = vmatpush.bf16.msra.mxu0 0
      %669 = vmatpush.bf16.msra.mxu0 0
      %670 = vmatpush.bf16.msra.mxu0 %v641
      %671 = vmatpush.bf16.msra.mxu0 %v613
      %672 = vmatmul.bf16.gmra.mxu0 %v632
      %v673 = vpop.f32.mrf.mxu0
      %v674 = vadd.f32 0.0, %v673
      %v675 = vpop.f32.mrf.mxu0
      %v676 = vadd.f32 0.0, %v675
      %677 = vmatmul.bf16.gmra.mxu0 %v635
      %v678 = vpop.f32.mrf.mxu0
      %v679 = vadd.f32 0.0, %v678
      %v680 = vpop.f32.mrf.mxu0
      %681 = vdwg.mxu0
      %682 = vmatpush.bf16.msra.mxu0 0
      %683 = vmatpush.bf16.msra.mxu0 0
      %684 = vmatpush.bf16.msra.mxu0 0
      %685 = vmatpush.bf16.msra.mxu0 0
      %686 = vmatpush.bf16.msra.mxu0 0
      %687 = vmatpush.bf16.msra.mxu0 0
      %688 = vmatpush.bf16.msra.mxu0 %v644
      %689 = vmatpush.bf16.msra.mxu0 %v617
      %690 = vmatmul.bf16.gmra.mxu0 %v632
      %v691 = vpop.f32.mrf.mxu0
      %v692 = vadd.f32 0.0, %v691
      %v693 = vpop.f32.mrf.mxu0
      %v694 = vadd.f32 0.0, %v693
      %695 = vmatmul.bf16.gmra.mxu0 %v635
      %v696 = vpop.f32.mrf.mxu0
      %v697 = vadd.f32 0.0, %v696
      %v698 = vpop.f32.mrf.mxu0
      %699 = vdwg.mxu0
      %703 = vrot.lane.b32.xlu0 %v658, 127
      %v704 = vpop.permute.xlu0 %703
      %705 = vrot.lane.b32.xlu0 %v676, 127
      %v706 = vpop.permute.xlu0 %705
      %707 = vrot.lane.b32.xlu0 %v694, 127
      %v708 = vpop.permute.xlu0 %707
      %v709 = vsel %vm518, %v704, %v706
      %v710 = vsel %vm518, %v706, %v708
      %v714 = vadd.f32 %v656, %v709
      %v715 = vadd.f32 %v674, %v710
      %v716 = vadd.f32 %v692, %v708
      %720 = vrot.lane.b32.xlu0 %v661, 126
      %v721 = vpop.permute.xlu0 %720
      %722 = vrot.lane.b32.xlu0 %v679, 126
      %v723 = vpop.permute.xlu0 %722
      %724 = vrot.lane.b32.xlu0 %v697, 126
      %v725 = vpop.permute.xlu0 %724
      %v726 = vsel %vm536, %v721, %v723
      %v727 = vsel %vm536, %v723, %v725
      %v731 = vadd.f32 %v714, %v726
      %v732 = vadd.f32 %v715, %v727
      %v733 = vadd.f32 %v716, %v725
      %735 = vset.pattern.permute.xlu0 0
      %736 = vperm.xlu0 %735, %v582
      %v737 = vpop.permute.xlu0 %736
      %v739 = vadd.f32 %v731, %v737
      %v740 = vadd.f32 %v732, %v737
      %v741 = vadd.f32 %v733, %v737
      %v742 = vmax.f32 %v739, 0.0
      %v743 = vmax.f32 %v740, 0.0
      %v744 = vmax.f32 %v741, 0.0
      %v745 = vmul.f32 %v742, %v368
      %v746 = vmul.f32 %v743, %v369
      %v747 = vmul.f32 %v744, %v370
      %v748 = vpack.c.bf16 %v746, %v745
      %v749 = vpack.c.bf16 %v747, %v747
      %752 = vrot.lane.b32.xlu0 %v748, 19
      %v753 = vpop.permute.xlu0 %752
      %754 = vrot.lane.b32.xlu0 %v749, 19
      %v755 = vpop.permute.xlu0 %754
      %v756 = vrot.slane %v753, 4
      %v757 = vsel %vm568, %v756, %v753
      %v758 = vsel %vm568, %v756, %v755
      %761 = vst.msk [vmem:[#allocation2] sm:$0xff] %vm575, %v757
      %762 = vst.msk [vmem:[#allocation2 + $0x8] sm:$0xf] %vm577, %v758
      %v763 = vld [vmem:[#allocation2] sm:$0xff]
      %v764 = vld [vmem:[#allocation2 + $0x8] sm:$0xf]
      %s765 = scalar_lea.vmem %s5, 16
      %v766 = vld [vmem:[%s765] sm:$0xff]
      %v769 = vunpack.c.l.b16 %v763
      %v770 = vunpack.c.h.b16 %v763
      %v771 = vunpack.c.l.b16 %v764
      %v772 = vpack.c.b16 %v769, %v769
      %v773 = vpack.c.b16 %v770, %v770
      %v774 = vpack.c.b16 %v771, %v771
      %775 = vrot.lane.b32.xlu0 %v772, 110
      %v776 = vpop.permute.xlu0 %775
      %777 = vrot.lane.b32.xlu0 %v773, 110
      %v778 = vpop.permute.xlu0 %777
      %779 = vrot.lane.b32.xlu0 %v774, 110
      %v780 = vpop.permute.xlu0 %779
      %v781 = vsel %vm396, %v776, %v778
      %v782 = vsel %vm396, %v778, %v780
      %783 = vrot.lane.b32.xlu0 %v772, 92
      %v784 = vpop.permute.xlu0 %783
      %785 = vrot.lane.b32.xlu0 %v773, 92
      %v786 = vpop.permute.xlu0 %785
      %787 = vrot.lane.b32.xlu0 %v774, 92
      %v788 = vpop.permute.xlu0 %787
      %v789 = vsel %vm413, %v784, %v786
      %v790 = vsel %vm413, %v786, %v788
      %v793 = vsel %vm423, %v772, %v781
      %v797 = vsel %vm423, %v773, %v782
      %v801 = vsel %vm423, %v774, %v780
      %v803 = vld [vmem:[%s3] sm:$0xf]
      %v804 = vld [vmem:[%s3 + $0x4] sm:$0xf]
      %v805 = vld [vmem:[%s3 + $0x8] sm:$0xf]
      %v809 = vunpack.c.l.b16 %v803
      %v810 = vunpack.c.l.b16 %v804
      %v811 = vunpack.c.l.b16 %v805
      %v812 = vpack.c.b16 %v810, %v809
      %v813 = vpack.c.b16 %v811, %v811
      %v815 = vsel %vm630, %v812, 0
      %v818 = vsel %vm630, %v813, 0
      %v821 = vsel %vm423, %v789, 0
      %v824 = vsel %vm423, %v790, 0
      %v827 = vsel %vm423, %v788, 0
      %829 = vmatpush.bf16.msra.mxu0 0
      %830 = vmatpush.bf16.msra.mxu0 0
      %831 = vmatpush.bf16.msra.mxu0 0
      %832 = vmatpush.bf16.msra.mxu0 0
      %833 = vmatpush.bf16.msra.mxu0 0
      %834 = vmatpush.bf16.msra.mxu0 0
      %835 = vmatpush.bf16.msra.mxu0 %v821
      %836 = vmatpush.bf16.msra.mxu0 %v793
      %837 = vmatmul.bf16.gmra.mxu0 %v815
      %v838 = vpop.f32.mrf.mxu0
      %v839 = vadd.f32 0.0, %v838
      %v840 = vpop.f32.mrf.mxu0
      %v841 = vadd.f32 0.0, %v840
      %842 = vmatmul.bf16.gmra.mxu0 %v818
      %v843 = vpop.f32.mrf.mxu0
      %v844 = vadd.f32 0.0, %v843
      %v845 = vpop.f32.mrf.mxu0
      %846 = vdwg.mxu0
      %847 = vmatpush.bf16.msra.mxu0 0
      %848 = vmatpush.bf16.msra.mxu0 0
      %849 = vmatpush.bf16.msra.mxu0 0
      %850 = vmatpush.bf16.msra.mxu0 0
      %851 = vmatpush.bf16.msra.mxu0 0
      %852 = vmatpush.bf16.msra.mxu0 0
      %853 = vmatpush.bf16.msra.mxu0 %v824
      %854 = vmatpush.bf16.msra.mxu0 %v797
      %855 = vmatmul.bf16.gmra.mxu0 %v815
      %v856 = vpop.f32.mrf.mxu0
      %v857 = vadd.f32 0.0, %v856
      %v858 = vpop.f32.mrf.mxu0
      %v859 = vadd.f32 0.0, %v858
      %860 = vmatmul.bf16.gmra.mxu0 %v818
      %v861 = vpop.f32.mrf.mxu0
      %v862 = vadd.f32 0.0, %v861
      %v863 = vpop.f32.mrf.mxu0
      %864 = vdwg.mxu0
      %865 = vmatpush.bf16.msra.mxu0 0
      %866 = vmatpush.bf16.msra.mxu0 0
      %867 = vmatpush.bf16.msra.mxu0 0
      %868 = vmatpush.bf16.msra.mxu0 0
      %869 = vmatpush.bf16.msra.mxu0 0
      %870 = vmatpush.bf16.msra.mxu0 0
      %871 = vmatpush.bf16.msra.mxu0 %v827
      %872 = vmatpush.bf16.msra.mxu0 %v801
      %873 = vmatmul.bf16.gmra.mxu0 %v815
      %v874 = vpop.f32.mrf.mxu0
      %v875 = vadd.f32 0.0, %v874
      %v876 = vpop.f32.mrf.mxu0
      %v877 = vadd.f32 0.0, %v876
      %878 = vmatmul.bf16.gmra.mxu0 %v818
      %v879 = vpop.f32.mrf.mxu0
      %v880 = vadd.f32 0.0, %v879
      %v881 = vpop.f32.mrf.mxu0
      %882 = vdwg.mxu0
      %886 = vrot.lane.b32.xlu0 %v841, 127
      %v887 = vpop.permute.xlu0 %886
      %888 = vrot.lane.b32.xlu0 %v859, 127
      %v889 = vpop.permute.xlu0 %888
      %890 = vrot.lane.b32.xlu0 %v877, 127
      %v891 = vpop.permute.xlu0 %890
      %v892 = vsel %vm518, %v887, %v889
      %v893 = vsel %vm518, %v889, %v891
      %v897 = vadd.f32 %v839, %v892
      %v898 = vadd.f32 %v857, %v893
      %v899 = vadd.f32 %v875, %v891
      %903 = vrot.lane.b32.xlu0 %v844, 126
      %v904 = vpop.permute.xlu0 %903
      %905 = vrot.lane.b32.xlu0 %v862, 126
      %v906 = vpop.permute.xlu0 %905
      %907 = vrot.lane.b32.xlu0 %v880, 126
      %v908 = vpop.permute.xlu0 %907
      %v909 = vsel %vm536, %v904, %v906
      %v910 = vsel %vm536, %v906, %v908
      %v914 = vadd.f32 %v897, %v909
      %v915 = vadd.f32 %v898, %v910
      %v916 = vadd.f32 %v899, %v908
      %918 = vset.pattern.permute.xlu0 0
      %919 = vperm.xlu0 %918, %v766
      %v920 = vpop.permute.xlu0 %919
      %v922 = vadd.f32 %v914, %v920
      %v923 = vadd.f32 %v915, %v920
      %v924 = vadd.f32 %v916, %v920
      %v925 = vmax.f32 %v922, 0.0
      %v926 = vmax.f32 %v923, 0.0
      %v927 = vmax.f32 %v924, 0.0
      %v928 = vmul.f32 %v925, %v368
      %v929 = vmul.f32 %v926, %v369
      %v930 = vmul.f32 %v927, %v370
      %v931 = vpack.c.bf16 %v929, %v928
      %v932 = vpack.c.bf16 %v930, %v930
      %935 = vrot.lane.b32.xlu0 %v931, 19
      %v936 = vpop.permute.xlu0 %935
      %937 = vrot.lane.b32.xlu0 %v932, 19
      %v938 = vpop.permute.xlu0 %937
      %v939 = vrot.slane %v936, 4
      %v940 = vsel %vm568, %v939, %v936
      %v941 = vsel %vm568, %v939, %v938
      %944 = vst.msk [vmem:[#allocation2] sm:$0xff] %vm575, %v940
      %945 = vst.msk [vmem:[#allocation2 + $0x8] sm:$0xf] %vm577, %v941
      %v946 = vld [vmem:[#allocation2] sm:$0xff]
      %v947 = vld [vmem:[#allocation2 + $0x8] sm:$0xf]
      %s948 = scalar_lea.vmem %s5, 24
      %v949 = vld [vmem:[%s948] sm:$0xff]
      %v952 = vunpack.c.l.b16 %v946
      %v953 = vunpack.c.h.b16 %v946
      %v954 = vunpack.c.l.b16 %v947
      %v955 = vpack.c.b16 %v952, %v952
      %v956 = vpack.c.b16 %v953, %v953
      %v957 = vpack.c.b16 %v954, %v954
      %958 = vrot.lane.b32.xlu0 %v955, 110
      %v959 = vpop.permute.xlu0 %958
      %960 = vrot.lane.b32.xlu0 %v956, 110
      %v961 = vpop.permute.xlu0 %960
      %962 = vrot.lane.b32.xlu0 %v957, 110
      %v963 = vpop.permute.xlu0 %962
      %v964 = vsel %vm396, %v959, %v961
      %v965 = vsel %vm396, %v961, %v963
      %966 = vrot.lane.b32.xlu0 %v955, 92
      %v967 = vpop.permute.xlu0 %966
      %968 = vrot.lane.b32.xlu0 %v956, 92
      %v969 = vpop.permute.xlu0 %968
      %970 = vrot.lane.b32.xlu0 %v957, 92
      %v971 = vpop.permute.xlu0 %970
      %v972 = vsel %vm413, %v967, %v969
      %v973 = vsel %vm413, %v969, %v971
      %v976 = vsel %vm423, %v955, %v964
      %v980 = vsel %vm423, %v956, %v965
      %v984 = vsel %vm423, %v957, %v963
      %v986 = vld [vmem:[%s4] sm:$0xf]
      %v987 = vld [vmem:[%s4 + $0x4] sm:$0xf]
      %v988 = vld [vmem:[%s4 + $0x8] sm:$0xf]
      %v992 = vunpack.c.l.b16 %v986
      %v993 = vunpack.c.l.b16 %v987
      %v994 = vunpack.c.l.b16 %v988
      %v995 = vpack.c.b16 %v993, %v992
      %v996 = vpack.c.b16 %v994, %v994
      %v998 = vsel %vm630, %v995, 0
      %v1001 = vsel %vm630, %v996, 0
      %v1004 = vsel %vm423, %v972, 0
      %v1007 = vsel %vm423, %v973, 0
      %v1010 = vsel %vm423, %v971, 0
      %1012 = vmatpush.bf16.msra.mxu0 0
      %1013 = vmatpush.bf16.msra.mxu0 0
      %1014 = vmatpush.bf16.msra.mxu0 0
      %1015 = vmatpush.bf16.msra.mxu0 0
      %1016 = vmatpush.bf16.msra.mxu0 0
      %1017 = vmatpush.bf16.msra.mxu0 0
      %1018 = vmatpush.bf16.msra.mxu0 %v1004
      %1019 = vmatpush.bf16.msra.mxu0 %v976
      %1020 = vmatmul.bf16.gmra.mxu0 %v998
      %v1021 = vpop.f32.mrf.mxu0
      %v1022 = vadd.f32 0.0, %v1021
      %v1023 = vpop.f32.mrf.mxu0
      %v1024 = vadd.f32 0.0, %v1023
      %1025 = vmatmul.bf16.gmra.mxu0 %v1001
      %v1026 = vpop.f32.mrf.mxu0
      %v1027 = vadd.f32 0.0, %v1026
      %v1028 = vpop.f32.mrf.mxu0
      %1029 = vdwg.mxu0
      %1030 = vmatpush.bf16.msra.mxu0 0
      %1031 = vmatpush.bf16.msra.mxu0 0
      %1032 = vmatpush.bf16.msra.mxu0 0
      %1033 = vmatpush.bf16.msra.mxu0 0
      %1034 = vmatpush.bf16.msra.mxu0 0
      %1035 = vmatpush.bf16.msra.mxu0 0
      %1036 = vmatpush.bf16.msra.mxu0 %v1007
      %1037 = vmatpush.bf16.msra.mxu0 %v980
      %1038 = vmatmul.bf16.gmra.mxu0 %v998
      %v1039 = vpop.f32.mrf.mxu0
      %v1040 = vadd.f32 0.0, %v1039
      %v1041 = vpop.f32.mrf.mxu0
      %v1042 = vadd.f32 0.0, %v1041
      %1043 = vmatmul.bf16.gmra.mxu0 %v1001
      %v1044 = vpop.f32.mrf.mxu0
      %v1045 = vadd.f32 0.0, %v1044
      %v1046 = vpop.f32.mrf.mxu0
      %1047 = vdwg.mxu0
      %1048 = vmatpush.bf16.msra.mxu0 0
      %1049 = vmatpush.bf16.msra.mxu0 0
      %1050 = vmatpush.bf16.msra.mxu0 0
      %1051 = vmatpush.bf16.msra.mxu0 0
      %1052 = vmatpush.bf16.msra.mxu0 0
      %1053 = vmatpush.bf16.msra.mxu0 0
      %1054 = vmatpush.bf16.msra.mxu0 %v1010
      %1055 = vmatpush.bf16.msra.mxu0 %v984
      %1056 = vmatmul.bf16.gmra.mxu0 %v998
      %v1057 = vpop.f32.mrf.mxu0
      %v1058 = vadd.f32 0.0, %v1057
      %v1059 = vpop.f32.mrf.mxu0
      %v1060 = vadd.f32 0.0, %v1059
      %1061 = vmatmul.bf16.gmra.mxu0 %v1001
      %v1062 = vpop.f32.mrf.mxu0
      %v1063 = vadd.f32 0.0, %v1062
      %v1064 = vpop.f32.mrf.mxu0
      %1065 = vdwg.mxu0
      %1069 = vrot.lane.b32.xlu0 %v1024, 127
      %v1070 = vpop.permute.xlu0 %1069
      %1071 = vrot.lane.b32.xlu0 %v1042, 127
      %v1072 = vpop.permute.xlu0 %1071
      %1073 = vrot.lane.b32.xlu0 %v1060, 127
      %v1074 = vpop.permute.xlu0 %1073
      %v1075 = vsel %vm518, %v1070, %v1072
      %v1076 = vsel %vm518, %v1072, %v1074
      %v1080 = vadd.f32 %v1022, %v1075
      %v1081 = vadd.f32 %v1040, %v1076
      %v1082 = vadd.f32 %v1058, %v1074
      %1086 = vrot.lane.b32.xlu0 %v1027, 126
      %v1087 = vpop.permute.xlu0 %1086
      %1088 = vrot.lane.b32.xlu0 %v1045, 126
      %v1089 = vpop.permute.xlu0 %1088
      %1090 = vrot.lane.b32.xlu0 %v1063, 126
      %v1091 = vpop.permute.xlu0 %1090
      %v1092 = vsel %vm536, %v1087, %v1089
      %v1093 = vsel %vm536, %v1089, %v1091
      %v1097 = vadd.f32 %v1080, %v1092
      %v1098 = vadd.f32 %v1081, %v1093
      %v1099 = vadd.f32 %v1082, %v1091
      %1101 = vset.pattern.permute.xlu0 0
      %1102 = vperm.xlu0 %1101, %v949
      %v1103 = vpop.permute.xlu0 %1102
      %v1105 = vadd.f32 %v1097, %v1103
      %v1106 = vadd.f32 %v1098, %v1103
      %v1107 = vadd.f32 %v1099, %v1103
      %v1108 = vmax.f32 %v1105, 0.0
      %v1109 = vmax.f32 %v1106, 0.0
      %v1110 = vmax.f32 %v1107, 0.0
      %v1111 = vadd.f32 %v1108, %v745
      %v1112 = vadd.f32 %v1109, %v746
      %v1113 = vadd.f32 %v1110, %v747
      %v1114 = vmax.f32 %v1111, 0.0
      %v1115 = vmax.f32 %v1112, 0.0
      %v1116 = vmax.f32 %v1113, 0.0
      %1118 = vrot.lane.b32.xlu0 %v1114, 127
      %v1119 = vpop.permute.xlu0 %1118
      %vm1121 = vcmask 130048
      %1122 = vst.msk [vmem:[%s251] sm:$0xff] %vm1121, %v1119
      %1123 = vrot.lane.b32.xlu0 %v1114, 125
      %v1124 = vpop.permute.xlu0 %1123
      %vm1126 = vcmask 261248
      %1127 = vst.msk [vmem:[%s251] sm:$0xff] %vm1126, %v1124
      %1128 = vrot.lane.b32.xlu0 %v1114, 123
      %v1129 = vpop.permute.xlu0 %1128
      %vm1131 = vcmask 392448
      %1132 = vst.msk [vmem:[%s251] sm:$0xff] %vm1131, %v1129
      %1133 = vrot.lane.b32.xlu0 %v1114, 121
      %v1134 = vpop.permute.xlu0 %1133
      %vm1136 = vcmask 523648
      %1137 = vst.msk [vmem:[%s251] sm:$0xff] %vm1136, %v1134
      %1138 = vrot.lane.b32.xlu0 %v1114, 119
      %v1139 = vpop.permute.xlu0 %1138
      %vm1141 = vcmask 654848
      %1142 = vst.msk [vmem:[%s251] sm:$0xff] %vm1141, %v1139
      %1143 = vrot.lane.b32.xlu0 %v1114, 117
      %v1144 = vpop.permute.xlu0 %1143
      %vm1146 = vcmask 786048
      %1147 = vst.msk [vmem:[%s251] sm:$0xff] %vm1146, %v1144
      %1148 = vrot.lane.b32.xlu0 %v1114, 115
      %v1149 = vpop.permute.xlu0 %1148
      %vm1151 = vcmask 917248
      %1152 = vst.msk [vmem:[%s251] sm:$0xff] %vm1151, %v1149
      %1154 = vrot.lane.b32.xlu0 %v1114, 113
      %v1155 = vpop.permute.xlu0 %1154
      %1156 = vrot.lane.b32.xlu0 %v1115, 113
      %v1157 = vpop.permute.xlu0 %1156
      %vm1158 = vcmask 924672
      %v1159 = vsel %vm1158, %v1155, %v1157
      %vm1161 = vcmask 1048448
      %1162 = vst.msk [vmem:[%s251] sm:$0xff] %vm1161, %v1159
      %1163 = vrot.lane.b32.xlu0 %v1115, 111
      %v1164 = vpop.permute.xlu0 %1163
      %1166 = vst.msk [vmem:[%s251 + $0x8] sm:$0xff] %vm1121, %v1164
      %1167 = vrot.lane.b32.xlu0 %v1115, 109
      %v1168 = vpop.permute.xlu0 %1167
      %1170 = vst.msk [vmem:[%s251 + $0x8] sm:$0xff] %vm1126, %v1168
      %1171 = vrot.lane.b32.xlu0 %v1115, 107
      %v1172 = vpop.permute.xlu0 %1171
      %1174 = vst.msk [vmem:[%s251 + $0x8] sm:$0xff] %vm1131, %v1172
      %1175 = vrot.lane.b32.xlu0 %v1115, 105
      %v1176 = vpop.permute.xlu0 %1175
      %1178 = vst.msk [vmem:[%s251 + $0x8] sm:$0xff] %vm1136, %v1176
      %1179 = vrot.lane.b32.xlu0 %v1115, 103
      %v1180 = vpop.permute.xlu0 %1179
      %1182 = vst.msk [vmem:[%s251 + $0x8] sm:$0xff] %vm1141, %v1180
      %1183 = vrot.lane.b32.xlu0 %v1115, 101
      %v1184 = vpop.permute.xlu0 %1183
      %1186 = vst.msk [vmem:[%s251 + $0x8] sm:$0xff] %vm1146, %v1184
      %1188 = vrot.lane.b32.xlu0 %v1115, 99
      %v1189 = vpop.permute.xlu0 %1188
      %1190 = vrot.lane.b32.xlu0 %v1116, 99
      %v1191 = vpop.permute.xlu0 %1190
      %vm1192 = vcmask 809984
      %v1193 = vsel %vm1192, %v1189, %v1191
      %1195 = vst.msk [vmem:[%s251 + $0x8] sm:$0xff] %vm1151, %v1193
      %1196 = vrot.lane.b32.xlu0 %v1116, 97
      %v1197 = vpop.permute.xlu0 %1196
      %1199 = vst.msk [vmem:[%s251 + $0x8] sm:$0xff] %vm1161, %v1197
      %p1200 = scmp.lt.s32.totalorder %s17, 1
      %s1201 = scalar_select %p1200, %s17, 1
      %s1202 = smul.addr %s1201, 2
      %s1203 = smul.addr %s1202, 8
      %s1204 = scalar_lea.vmem %s6, %s1203
      // Predicated region
      $region45: #{basic_block_forward.1} parent=43 // pred_check
        %p1205 = pneg %p166
      $region46: #{basic_block_forward.1} parent=43 // pred_check_branch
        %1207 = sbr.rel (%p1205) target = $region48
      $region47: #{basic_block_forward.1} parent=43 // pred_region
        _
      $region48: #{basic_block_forward.1} parent=43 // pred_fallthru
        _
    $region44: #{basic_block_forward.1} parent=5 // pred_fallthru
      _
    %p1208 = scmp.le.s32.totalorder 2, %s12
    // Predicated region
    $region49: #{basic_block_forward.1} parent=5 // pred_check
      %p1209 = pneg %p1208
    $region50: #{basic_block_forward.1} parent=5 // pred_check_branch
      %1211 = sbr.rel (%p1209) target = $region52
    $region51: #{basic_block_forward.1} parent=5 // pred_region
      %s1212 = ssub.s32 %s12, 2
      // Predicated region
      $region53: #{basic_block_forward.1} parent=51 // pred_check
        %p1213 = pneg %p172
      $region54: #{basic_block_forward.1} parent=51 // pred_check_branch
        %1215 = sbr.rel (%p1213) target = $region56
      $region55: #{basic_block_forward.1} parent=51 // pred_region
        %p1216 = scmp.lt.s32.totalorder %s18, 1
        %s1217 = scalar_select %p1216, %s18, 1
        %s1218 = smul.addr %s1217, 2
        %s1219 = smul.addr %s1218, 8
        %s1220 = scalar_lea.vmem %s6, %s1219
      $region56: #{basic_block_forward.1} parent=51 // pred_fallthru
        _
    $region52: #{basic_block_forward.1} parent=5 // pred_fallthru
      _
  $region6: #{basic_block_forward.1} parent=0 // loop_footer
    %s16 = sadd.s32 1, %s12
  $region7: #{basic_block_forward.1} parent=0 // loop_footer_branch
    %11 = sbr.rel target = $region3
  $region8: #{basic_block_forward.1} parent=0 // loop_exit
    _

</llo_original>
